<compile_context>
chip_gen: v7x
topology: tpu7x:2x2x1
jax: 0.10.0
libtpu: 0.0.40
codegen_flags: <defaults>
</compile_context>

<pallas_src>
import jax
import jax.numpy as jnp
from jax.experimental import pallas as pl
from jax.experimental.pallas import tpu as pltpu


def _node_query_gap_kernel(xn_ref, vl_ref, q_ref,
                           w1_ref, b1_ref, w2_ref, b2_ref,
                           out_ref):
    xn = xn_ref[...]            # (Bt, Nn, D)
    q = q_ref[...]              # (Bt, Nq, D)
    vl = vl_ref[...]            # (Bt, 1) int32, number of valid node rows
    w1 = w1_ref[...]            # (1, D)
    b1 = b1_ref[...]            # (1, 1)
    w2 = w2_ref[...]            # (1, D)
    b2 = b2_ref[...]            # (1, 1)

    Bt, Nn, D = xn.shape
    Nq = q.shape[1]

    # ---- node pooling: masked softmax over the node axis (sublanes) ----
    # VPU broadcast-multiply + XLU lane reduce instead of a tiny MXU matmul.
    logits = jnp.sum(xn * w1[None, :, :], axis=-1, keepdims=True) + b1[None]   # (Bt, Nn, 1)
    node_idx = jax.lax.broadcasted_iota(jnp.int32, (Bt, Nn, 1), 1)
    valid = node_idx < vl[:, :, None]                                          # (Bt, Nn, 1)
    neg = jnp.float32(-1e30)
    ml = jnp.where(valid, logits, neg)
    m = jnp.max(ml, axis=1, keepdims=True)                                     # (Bt, 1, 1)
    e = jnp.where(valid, jnp.exp(ml - m), 0.0)                                 # (Bt, Nn, 1)
    denom = jnp.sum(e, axis=1, keepdims=True)                                  # (Bt, 1, 1)
    wts = e * pl.reciprocal(denom, approx=True)                                # (Bt, Nn, 1)
    pooled_nodes = jnp.sum(xn * wts, axis=1)                                   # (Bt, D)

    # ---- query pooling: softmax over Nq real rows + one implicit zero row ----
    ql = jnp.sum(q * w2[None, :, :], axis=-1, keepdims=True) + b2[None]        # (Bt, Nq, 1)
    pad_logit = b2[None]                                                       # (1, 1, 1): W @ 0 + b = b
    m2 = jnp.maximum(jnp.max(ql, axis=1, keepdims=True), pad_logit)            # (Bt, 1, 1)
    e2 = jnp.exp(ql - m2)                                                      # (Bt, Nq, 1)
    denom2 = jnp.sum(e2, axis=1, keepdims=True) + jnp.exp(pad_logit - m2)      # (Bt, 1, 1)
    wq = e2 * pl.reciprocal(denom2, approx=True)                               # (Bt, Nq, 1)
    # the zero pad row contributes nothing to the weighted sum (x_pad == 0)
    pooled_q = jnp.sum(q * wq, axis=1)                                         # (Bt, D)

    # direct slice stores into the lane-dense (Bt, 2*D) output block
    out_ref[:, :D] = pooled_nodes
    out_ref[:, D:] = pooled_q


def node_query_gap(x_nodes, valid_len, queries, w1, b1, w2, b2, *, bt=8):
    """x_nodes: (B, Nn, D) f32, valid_len: (B,) int (valid node rows per batch,
    padding assumed tail-contiguous), queries: (B, Nq, D) f32, w1/w2: (1, D),
    b1/b2: (1, 1).  Returns (B, 2*D) f32."""
    B, Nn, D = x_nodes.shape
    _, Nq, _ = queries.shape
    assert bt % 8 == 0, "bt must be a multiple of 8 (sublane tile)"

    Bp = pl.cdiv(B, bt) * bt
    if Bp != B:
        pad = Bp - B
        x_nodes = jnp.pad(x_nodes, ((0, pad), (0, 0), (0, 0)))
        queries = jnp.pad(queries, ((0, pad), (0, 0), (0, 0)))
        valid_len = jnp.pad(valid_len, ((0, pad),), constant_values=1)

    vl = valid_len.astype(jnp.int32).reshape(Bp, 1)
    w1 = w1.reshape(1, D).astype(jnp.float32)
    w2 = w2.reshape(1, D).astype(jnp.float32)
    b1 = b1.reshape(1, 1).astype(jnp.float32)
    b2 = b2.reshape(1, 1).astype(jnp.float32)

    out = pl.pallas_call(
        _node_query_gap_kernel,
        out_shape=jax.ShapeDtypeStruct((Bp, 2 * D), jnp.float32),
        grid_spec=pltpu.PrefetchScalarGridSpec(
            num_scalar_prefetch=0,
            grid=(Bp // bt,),
            in_specs=[
                pl.BlockSpec((bt, Nn, D), lambda b: (b, 0, 0)),   # x_nodes
                pl.BlockSpec((bt, 1), lambda b: (b, 0)),          # valid_len
                pl.BlockSpec((bt, Nq, D), lambda b: (b, 0, 0)),   # queries
                pl.BlockSpec((1, D), lambda b: (0, 0)),           # w1
                pl.BlockSpec((1, 1), lambda b: (0, 0)),           # b1
                pl.BlockSpec((1, D), lambda b: (0, 0)),           # w2
                pl.BlockSpec((1, 1), lambda b: (0, 0)),           # b2
            ],
            out_specs=pl.BlockSpec((bt, 2 * D), lambda b: (b, 0)),
        ),
        compiler_params=pltpu.CompilerParams(
            dimension_semantics=("parallel",)),   # >= 2 grid steps -> both v7x TCs busy
    )(x_nodes, vl, queries, w1, b1, w2, b2)
    return out[:B]


def reference(x_nodes, pad_mask, queries, w1, b1, w2, b2):
    """Pure-JAX mirror of NodeQueryGAP.forward for verification."""
    logits = x_nodes @ w1.T + b1                                  # (B, Nn, 1)
    m = pad_mask[..., None]
    logits = jnp.where(m, -jnp.inf, logits)
    wts = jax.nn.softmax(logits, axis=1)
    wts = jnp.where(m, 0.0, wts)
    pooled_nodes = jnp.sum(x_nodes * wts, axis=1)                 # (B, D)

    B, Nq, D = queries.shape
    pq = jnp.concatenate([queries, jnp.zeros((B, 1, D), queries.dtype)], axis=1)
    ql = pq @ w2.T + b2                                           # (B, Nq+1, 1)
    wq = jax.nn.softmax(ql, axis=1)
    pooled_q = jnp.sum(pq * wq, axis=1)                           # (B, D)
    return jnp.concatenate([pooled_nodes, pooled_q], axis=-1)


if __name__ == "__main__":
    key = jax.random.PRNGKey(0)
    B, D = 16, 64                              # 2*D = 128 -> lane-dense output
    N_tracks, N_flows, Nq = 12, 4, 8           # node constituents + object queries
    Nn = N_tracks + N_flows

    ks = jax.random.split(key, 8)
    # inputs: dict-of-tensors flattened outside the kernel (glue for flatten_tensor_dict)
    tracks = jax.random.normal(ks[0], (B, N_tracks, D), jnp.float32)
    flows = jax.random.normal(ks[1], (B, N_flows, D), jnp.float32)
    emb_queries = jax.random.normal(ks[2], (B, Nq, D), jnp.float32)
    x_nodes = jnp.concatenate([tracks, flows], axis=1)            # (B, Nn, D)

    # deterministic per-batch valid lengths (tail-contiguous padding)
    valid_len = 1 + (jnp.arange(B, dtype=jnp.int32) * 5) % Nn     # in [1, Nn]
    pad_mask = jnp.arange(Nn)[None, :] >= valid_len[:, None]      # (B, Nn) bool, True == padded

    # gate_nn_1 / gate_nn_2 = nn.Linear(D, 1); weights stored as (1, D)
    w1 = jax.random.normal(ks[3], (1, D), jnp.float32) / jnp.sqrt(D)
    b1 = jax.random.normal(ks[4], (1, 1), jnp.float32) * 0.1
    w2 = jax.random.normal(ks[5], (1, D), jnp.float32) / jnp.sqrt(D)
    b2 = jax.random.normal(ks[6], (1, 1), jnp.float32) * 0.1

    out = node_query_gap(x_nodes, valid_len, emb_queries, w1, b1, w2, b2, bt=8)
    out = jax.block_until_ready(out)

    ref = reference(x_nodes, pad_mask, emb_queries, w1, b1, w2, b2)
    assert out.shape == (B, 2 * D), out.shape
    # tolerance accounts for the EUP approximate reciprocal in the softmax norm
    assert jnp.allclose(out, ref, atol=3e-3, rtol=3e-3), (
        f"max abs err {jnp.max(jnp.abs(out - ref))}")

    print("KERNEL_OK")
</pallas_src>

<mosaic_0001>
module attributes {stable_mosaic.version = 11 : i64} {
  func.func @_node_query_gap_kernel(%arg0: i32, %arg1: memref<8x16x64xf32, #tpu.memory_space<vmem>>, %arg2: memref<8x1xi32, #tpu.memory_space<vmem>>, %arg3: memref<8x8x64xf32, #tpu.memory_space<vmem>>, %arg4: memref<1x64xf32, #tpu.memory_space<vmem>>, %arg5: memref<1x1xf32, #tpu.memory_space<vmem>>, %arg6: memref<1x64xf32, #tpu.memory_space<vmem>>, %arg7: memref<1x1xf32, #tpu.memory_space<vmem>>, %arg8: memref<8x128xf32, #tpu.memory_space<vmem>>) attributes {dimension_semantics = [#tpu.dimension_semantics<parallel>], iteration_bounds = array<i64: 2>, scalar_prefetch = 0 : i64, scratch_operands = 0 : i64, tpu.core_type = #tpu.core_type<tc>, window_params = [{transform_indices = @transform_0, window_bounds = array<i64: 8, 16, 64>}, {transform_indices = @transform_1, window_bounds = array<i64: 8, 1>}, {transform_indices = @transform_2, window_bounds = array<i64: 8, 8, 64>}, {pipeline_mode = #tpu.pipeline_mode<synchronous>, transform_indices = @transform_3, window_bounds = array<i64: 1, 64>}, {pipeline_mode = #tpu.pipeline_mode<synchronous>, transform_indices = @transform_4, window_bounds = array<i64: 1, 1>}, {pipeline_mode = #tpu.pipeline_mode<synchronous>, transform_indices = @transform_5, window_bounds = array<i64: 1, 64>}, {pipeline_mode = #tpu.pipeline_mode<synchronous>, transform_indices = @transform_6, window_bounds = array<i64: 1, 1>}, {transform_indices = @transform_7, window_bounds = array<i64: 8, 128>}]} {
    %c0 = arith.constant 0 : index
    %c0_0 = arith.constant 0 : index
    %c0_1 = arith.constant 0 : index
    %0 = vector.load %arg1[%c0, %c0_0, %c0_1] : memref<8x16x64xf32, #tpu.memory_space<vmem>>, vector<8x16x64xf32>
    %c0_2 = arith.constant 0 : index
    %c0_3 = arith.constant 0 : index
    %c0_4 = arith.constant 0 : index
    %1 = vector.load %arg3[%c0_2, %c0_3, %c0_4] : memref<8x8x64xf32, #tpu.memory_space<vmem>>, vector<8x8x64xf32>
    %c0_5 = arith.constant 0 : index
    %c0_6 = arith.constant 0 : index
    %2 = vector.load %arg2[%c0_5, %c0_6] : memref<8x1xi32, #tpu.memory_space<vmem>>, vector<8x1xi32>
    %c0_7 = arith.constant 0 : index
    %c0_8 = arith.constant 0 : index
    %3 = vector.load %arg4[%c0_7, %c0_8] : memref<1x64xf32, #tpu.memory_space<vmem>>, vector<1x64xf32>
    %c0_9 = arith.constant 0 : index
    %c0_10 = arith.constant 0 : index
    %4 = vector.load %arg5[%c0_9, %c0_10] : memref<1x1xf32, #tpu.memory_space<vmem>>, vector<1x1xf32>
    %c0_11 = arith.constant 0 : index
    %c0_12 = arith.constant 0 : index
    %5 = vector.load %arg6[%c0_11, %c0_12] : memref<1x64xf32, #tpu.memory_space<vmem>>, vector<1x64xf32>
    %c0_13 = arith.constant 0 : index
    %c0_14 = arith.constant 0 : index
    %6 = vector.load %arg7[%c0_13, %c0_14] : memref<1x1xf32, #tpu.memory_space<vmem>>, vector<1x1xf32>
    %7 = vector.shape_cast %3 : vector<1x64xf32> to vector<1x1x64xf32>
    %8 = vector.broadcast %7 : vector<1x1x64xf32> to vector<8x16x64xf32>
    %9 = arith.mulf %0, %8 : vector<8x16x64xf32>
    %cst = arith.constant dense<0.000000e+00> : vector<8x16xf32>
    %10 = vector.multi_reduction <add>, %9, %cst [2] : vector<8x16x64xf32> to vector<8x16xf32>
    %11 = vector.shape_cast %10 : vector<8x16xf32> to vector<8x16x1xf32>
    %12 = vector.shape_cast %4 : vector<1x1xf32> to vector<1x1x1xf32>
    %13 = vector.broadcast %12 : vector<1x1x1xf32> to vector<8x16x1xf32>
    %14 = arith.addf %11, %13 : vector<8x16x1xf32>
    %15 = tpu.iota {dimensions = array<i32: 1>} : vector<8x16x1xi32>
    %16 = vector.shape_cast %2 : vector<8x1xi32> to vector<8x1x1xi32>
    %17 = vector.broadcast %16 : vector<8x1x1xi32> to vector<8x16x1xi32>
    %18 = arith.cmpi slt, %15, %17 : vector<8x16x1xi32>
    %cst_15 = arith.constant -1.000000e+30 : f32
    %19 = vector.broadcast %cst_15 : f32 to vector<8x16x1xf32>
    %20 = arith.select %18, %14, %19 : vector<8x16x1xi1>, vector<8x16x1xf32>
    %cst_16 = arith.constant dense<0xFF800000> : vector<8x1xf32>
    %21 = vector.multi_reduction <maximumf>, %20, %cst_16 [1] : vector<8x16x1xf32> to vector<8x1xf32>
    %22 = vector.shape_cast %21 : vector<8x1xf32> to vector<8x1x1xf32>
    %23 = vector.broadcast %22 : vector<8x1x1xf32> to vector<8x16x1xf32>
    %24 = arith.subf %20, %23 : vector<8x16x1xf32>
    %25 = math.exp %24 : vector<8x16x1xf32>
    %cst_17 = arith.constant 0.000000e+00 : f32
    %26 = vector.broadcast %cst_17 : f32 to vector<8x16x1xf32>
    %27 = arith.select %18, %25, %26 : vector<8x16x1xi1>, vector<8x16x1xf32>
    %cst_18 = arith.constant dense<0.000000e+00> : vector<8x1xf32>
    %28 = vector.multi_reduction <add>, %27, %cst_18 [1] : vector<8x16x1xf32> to vector<8x1xf32>
    %29 = vector.shape_cast %28 : vector<8x1xf32> to vector<8x1x1xf32>
    %30 = tpu.reciprocal %29 {approx = true} : vector<8x1x1xf32> -> vector<8x1x1xf32>
    %31 = vector.broadcast %30 : vector<8x1x1xf32> to vector<8x16x1xf32>
    %32 = arith.mulf %27, %31 : vector<8x16x1xf32>
    %33 = vector.broadcast %32 : vector<8x16x1xf32> to vector<8x16x64xf32>
    %34 = arith.mulf %0, %33 : vector<8x16x64xf32>
    %cst_19 = arith.constant dense<0.000000e+00> : vector<8x64xf32>
    %35 = vector.multi_reduction <add>, %34, %cst_19 [1] : vector<8x16x64xf32> to vector<8x64xf32>
    %36 = vector.shape_cast %5 : vector<1x64xf32> to vector<1x1x64xf32>
    %37 = vector.broadcast %36 : vector<1x1x64xf32> to vector<8x8x64xf32>
    %38 = arith.mulf %1, %37 : vector<8x8x64xf32>
    %cst_20 = arith.constant dense<0.000000e+00> : vector<8x8xf32>
    %39 = vector.multi_reduction <add>, %38, %cst_20 [2] : vector<8x8x64xf32> to vector<8x8xf32>
    %40 = vector.shape_cast %39 : vector<8x8xf32> to vector<8x8x1xf32>
    %41 = vector.shape_cast %6 : vector<1x1xf32> to vector<1x1x1xf32>
    %42 = vector.broadcast %41 : vector<1x1x1xf32> to vector<8x8x1xf32>
    %43 = arith.addf %40, %42 : vector<8x8x1xf32>
    %44 = vector.shape_cast %6 : vector<1x1xf32> to vector<1x1x1xf32>
    %cst_21 = arith.constant dense<0xFF800000> : vector<8x1xf32>
    %45 = vector.multi_reduction <maximumf>, %43, %cst_21 [1] : vector<8x8x1xf32> to vector<8x1xf32>
    %46 = vector.shape_cast %45 : vector<8x1xf32> to vector<8x1x1xf32>
    %47 = vector.broadcast %44 : vector<1x1x1xf32> to vector<8x1x1xf32>
    %48 = arith.maximumf %46, %47 : vector<8x1x1xf32>
    %49 = vector.broadcast %48 : vector<8x1x1xf32> to vector<8x8x1xf32>
    %50 = arith.subf %43, %49 : vector<8x8x1xf32>
    %51 = math.exp %50 : vector<8x8x1xf32>
    %cst_22 = arith.constant dense<0.000000e+00> : vector<8x1xf32>
    %52 = vector.multi_reduction <add>, %51, %cst_22 [1] : vector<8x8x1xf32> to vector<8x1xf32>
    %53 = vector.shape_cast %52 : vector<8x1xf32> to vector<8x1x1xf32>
    %54 = vector.broadcast %44 : vector<1x1x1xf32> to vector<8x1x1xf32>
    %55 = arith.subf %54, %48 : vector<8x1x1xf32>
    %56 = math.exp %55 : vector<8x1x1xf32>
    %57 = arith.addf %53, %56 : vector<8x1x1xf32>
    %58 = tpu.reciprocal %57 {approx = true} : vector<8x1x1xf32> -> vector<8x1x1xf32>
    %59 = vector.broadcast %58 : vector<8x1x1xf32> to vector<8x8x1xf32>
    %60 = arith.mulf %51, %59 : vector<8x8x1xf32>
    %61 = vector.broadcast %60 : vector<8x8x1xf32> to vector<8x8x64xf32>
    %62 = arith.mulf %1, %61 : vector<8x8x64xf32>
    %cst_23 = arith.constant dense<0.000000e+00> : vector<8x64xf32>
    %63 = vector.multi_reduction <add>, %62, %cst_23 [1] : vector<8x8x64xf32> to vector<8x64xf32>
    %c0_24 = arith.constant 0 : index
    %c0_25 = arith.constant 0 : index
    %64 = vector.load %arg8[%c0_24, %c0_25] : memref<8x128xf32, #tpu.memory_space<vmem>>, vector<8x64xf32>
    tpu.vector_store %arg8[%c0_24, %c0_25], %35 {strides = array<i32>} : memref<8x128xf32, #tpu.memory_space<vmem>>, vector<8x64xf32>,
    %c0_26 = arith.constant 0 : index
    %c64 = arith.constant 64 : index
    %65 = vector.load %arg8[%c0_26, %c64] : memref<8x128xf32, #tpu.memory_space<vmem>>, vector<8x64xf32>
    tpu.vector_store %arg8[%c0_26, %c64], %63 {strides = array<i32>} : memref<8x128xf32, #tpu.memory_space<vmem>>, vector<8x64xf32>,
    return
  }
  func.func @transform_0(%arg0: i32) -> (i32, i32, i32) {
    %c0_i32 = arith.constant 0 : i32
    %c0_i32_0 = arith.constant 0 : i32
    %c0_i32_1 = arith.constant 0 : i32
    return %arg0, %c0_i32, %c0_i32_0 : i32, i32, i32
  }
  func.func @transform_1(%arg0: i32) -> (i32, i32) {
    %c0_i32 = arith.constant 0 : i32
    %c0_i32_0 = arith.constant 0 : i32
    return %arg0, %c0_i32 : i32, i32
  }
  func.func @transform_2(%arg0: i32) -> (i32, i32, i32) {
    %c0_i32 = arith.constant 0 : i32
    %c0_i32_0 = arith.constant 0 : i32
    %c0_i32_1 = arith.constant 0 : i32
    return %arg0, %c0_i32, %c0_i32_0 : i32, i32, i32
  }
  func.func @transform_3(%arg0: i32) -> (i32, i32) {
    %c0_i32 = arith.constant 0 : i32
    %c0_i32_0 = arith.constant 0 : i32
    %c0_i32_1 = arith.constant 0 : i32
    return %c0_i32, %c0_i32_0 : i32, i32
  }
  func.func @transform_4(%arg0: i32) -> (i32, i32) {
    %c0_i32 = arith.constant 0 : i32
    %c0_i32_0 = arith.constant 0 : i32
    %c0_i32_1 = arith.constant 0 : i32
    return %c0_i32, %c0_i32_0 : i32, i32
  }
  func.func @transform_5(%arg0: i32) -> (i32, i32) {
    %c0_i32 = arith.constant 0 : i32
    %c0_i32_0 = arith.constant 0 : i32
    %c0_i32_1 = arith.constant 0 : i32
    return %c0_i32, %c0_i32_0 : i32, i32
  }
  func.func @transform_6(%arg0: i32) -> (i32, i32) {
    %c0_i32 = arith.constant 0 : i32
    %c0_i32_0 = arith.constant 0 : i32
    %c0_i32_1 = arith.constant 0 : i32
    return %c0_i32, %c0_i32_0 : i32, i32
  }
  func.func @transform_7(%arg0: i32) -> (i32, i32) {
    %c0_i32 = arith.constant 0 : i32
    %c0_i32_0 = arith.constant 0 : i32
    return %arg0, %c0_i32 : i32, i32
  }
}

</mosaic_0001>

<llo_original>
// kernel: tpu_custom_call.1
$region0: #{tpu_custom_call.1}
  #allocation0 [shape = 'u32[]', space=smem, size = 0x4, offset = 0x4, fixed_abs, tag = 'smem constant byte address 0x4 - core index']
  #allocation1 [shape = 'u32[144,128]{1,0:T(1,128)}', space=vmem, size = 0x12000, scoped, tag = 'internal scratch']
  #allocation2 [shape = 'f32[1,1]{1,0:T(1,128)S(1)}', space=vmem, size = 0x200, scoped, tag = 'scoped memory for tpu_custom_call.1']
  #allocation3 [shape = 'f32[1,1]{1,0:T(1,128)S(1)}', space=vmem, size = 0x200, scoped, tag = 'scoped memory for tpu_custom_call.1']
  %s0 = inlined_call_operand.hbm [shape: f32[16,16,64], index: 0, kind: input, shape index: {}]
  %s1 = inlined_call_operand.vmem [shape: s32[16,1], index: 1, kind: input, shape index: {}]
  %s2 = inlined_call_operand.hbm [shape: f32[16,8,64], index: 2, kind: input, shape index: {}]
  %s3 = inlined_call_operand.vmem [shape: f32[1,64], index: 3, kind: input, shape index: {}]
  %s4 = inlined_call_operand.<no memory space> [shape: f32[1,1], index: 4, kind: input, shape index: {}]
  %s5 = inlined_call_operand.vmem [shape: f32[1,64], index: 5, kind: input, shape index: {}]
  %s6 = inlined_call_operand.<no memory space> [shape: f32[1,1], index: 6, kind: input, shape index: {}]
  %s7 = inlined_call_operand.hbm [shape: f32[16,128], index: 7, kind: output, shape index: {}]
  %s8 = sld [smem:[#allocation0]]
  $region69: #{tpu_custom_call.1} parent=0
    _
  %s10 = ssub.s32 1, %s8
  %s11 = scalar_select 0, %s10, %s8
  %v12 = vstv %s4
  %13 = vst [vmem:[#allocation2] sm:$0x1] %v12
  %v14 = vstv %s6
  %15 = vst [vmem:[#allocation3] sm:$0x1] %v14
  $region1: #{tpu_custom_call.1} parent=0
    #allocation4 [shape = 'u8[131072]{0}', space=vmem, size = 0x20000, scoped, tag = 'input window, operand 0']
    #allocation5 [shape = 's32[2]{0}', space=sflag, size = 0x8, scoped, tag = 'scoped memory for tpu_custom_call.1']
    #allocation6 [shape = 's32[2]{0}', space=sflag, size = 0x8, scoped, tag = 'scoped memory for tpu_custom_call.1']
    #allocation7 [shape = 'u8[65536]{0}', space=vmem, size = 0x10000, scoped, tag = 'input window, operand 2']
    #allocation8 [shape = 's32[2]{0}', space=sflag, size = 0x8, scoped, tag = 'scoped memory for tpu_custom_call.1']
    #allocation9 [shape = 'u8[8192]{0}', space=vmem, size = 0x2000, scoped, tag = 'output window, operand 0']
    %16 = vsyncpa [#allocation5], 0
    %s17 = scalar_lea.sflag [#allocation5], 1
    %18 = vsyncpa %s17, 0
    %19 = vsyncpa [#allocation8], 0
    %s20 = scalar_lea.sflag [#allocation8], 1
    %21 = vsyncpa %s20, 0
    %22 = vsyncpa [#allocation6], 0
    %s23 = scalar_lea.sflag [#allocation6], 1
    %24 = vsyncpa %s23, 0
    loop: start=0, step=1, limit=4
    $region2: #{tpu_custom_call.1} parent=1 // loop_pre_header
      _
    $region3: #{tpu_custom_call.1} parent=1 // loop_header
      %s26 = sphi 0, %s30
      %p27 = scmp.ge.s32.totalorder %s26, 4
      %s36 = sphi 0, %s38
      %s39 = sphi 0, %s36
      %s40 = sphi 0, %s39
      %s56 = sphi 0, %s40
      %s62 = sphi 0, %s64
      %s65 = sphi 0, %s62
      %s66 = sphi 0, %s65
      %s82 = sphi 0, %s66
      %s88 = sphi 0, %s90
      %s91 = sphi 0, %s88
      %s92 = sphi 0, %s91
      %s108 = sphi 0, %s92
      %s112 = sphi 0, %s112
      %s114 = sphi 0, %s112
      %s115 = sphi 0, %s114
      %s129 = sphi 0, %s115
      %s133 = sphi 0, %s133
      %s135 = sphi 0, %s133
      %s136 = sphi 0, %s135
      %s150 = sphi 0, %s136
      %s154 = sphi 0, %s154
      %s156 = sphi 0, %s154
      %s157 = sphi 0, %s156
      %s171 = sphi 0, %s157
      %s175 = sphi 0, %s175
      %s177 = sphi 0, %s175
      %s178 = sphi 0, %s177
      %s192 = sphi 0, %s178
      %s198 = sphi 0, %s200
      %s201 = sphi 0, %s198
      %s202 = sphi 0, %s201
      %s218 = sphi 0, %s202
    $region4: #{tpu_custom_call.1} parent=1 // loop_header_branch
      %29 = sbr.rel (%p27) target = $region8
    $region5: #{tpu_custom_call.1} parent=1 // loop_body
      %s31 = ssub.s32 %s26, 1
      %s32 = ssub.s32 %s26, 2
      %s33 = sadd.s32 %s26, 1
      %s34 = ssub.s32 %s26, %s33
      %p35 = scmp.eq.s32.totalorder %s34, 0
      %s37 = sadd.s32 %s36, 1
      %s38 = scalar_select %p35, %s36, %s37
      %p41 = pneg %p35
      %p42 = scmp.eq.s32.totalorder %s26, 1
      %p43 = por %p41, %p42
      %p44 = scmp.ne.s32.totalorder %s36, %s39
      %p45 = scmp.eq.s32.totalorder %s26, 0
      %p46 = por %p44, %p45
      %p47 = scmp.ne.s32.totalorder %s36, %s39
      %p48 = scmp.eq.s32.totalorder %s31, 1
      %p49 = por %p47, %p48
      %p50 = scmp.ne.s32.totalorder %s39, %s40
      %p51 = scmp.eq.s32.totalorder %s31, 0
      %p52 = por %p50, %p51
      %p53 = scmp.ne.s32.totalorder %s39, %s40
      %p54 = scmp.eq.s32.totalorder %s32, 1
      %p55 = por %p53, %p54
      %p57 = scmp.ne.s32.totalorder %s40, %s56
      %p58 = scmp.eq.s32.totalorder %s32, 0
      %p59 = por %p57, %p58
      %s60 = ssub.s32 %s26, %s33
      %p61 = scmp.eq.s32.totalorder %s60, 0
      %s63 = sadd.s32 %s62, 1
      %s64 = scalar_select %p61, %s62, %s63
      %p67 = pneg %p61
      %p68 = scmp.eq.s32.totalorder %s26, 1
      %p69 = por %p67, %p68
      %p70 = scmp.ne.s32.totalorder %s62, %s65
      %p71 = scmp.eq.s32.totalorder %s26, 0
      %p72 = por %p70, %p71
      %p73 = scmp.ne.s32.totalorder %s62, %s65
      %p74 = scmp.eq.s32.totalorder %s31, 1
      %p75 = por %p73, %p74
      %p76 = scmp.ne.s32.totalorder %s65, %s66
      %p77 = scmp.eq.s32.totalorder %s31, 0
      %p78 = por %p76, %p77
      %p79 = scmp.ne.s32.totalorder %s65, %s66
      %p80 = scmp.eq.s32.totalorder %s32, 1
      %p81 = por %p79, %p80
      %p83 = scmp.ne.s32.totalorder %s66, %s82
      %p84 = scmp.eq.s32.totalorder %s32, 0
      %p85 = por %p83, %p84
      %s86 = ssub.s32 %s26, %s33
      %p87 = scmp.eq.s32.totalorder %s86, 0
      %s89 = sadd.s32 %s88, 1
      %s90 = scalar_select %p87, %s88, %s89
      %p93 = pneg %p87
      %p94 = scmp.eq.s32.totalorder %s26, 1
      %p95 = por %p93, %p94
      %p96 = scmp.ne.s32.totalorder %s88, %s91
      %p97 = scmp.eq.s32.totalorder %s26, 0
      %p98 = por %p96, %p97
      %p99 = scmp.ne.s32.totalorder %s88, %s91
      %p100 = scmp.eq.s32.totalorder %s31, 1
      %p101 = por %p99, %p100
      %p102 = scmp.ne.s32.totalorder %s91, %s92
      %p103 = scmp.eq.s32.totalorder %s31, 0
      %p104 = por %p102, %p103
      %p105 = scmp.ne.s32.totalorder %s91, %s92
      %p106 = scmp.eq.s32.totalorder %s32, 1
      %p107 = por %p105, %p106
      %p109 = scmp.ne.s32.totalorder %s92, %s108
      %p110 = scmp.eq.s32.totalorder %s32, 0
      %p111 = por %p109, %p110
      %s113 = sadd.s32 %s112, 1
      %p116 = scmp.eq.s32.totalorder %s26, 1
      %p117 = scmp.ne.s32.totalorder %s112, %s114
      %p118 = scmp.eq.s32.totalorder %s26, 0
      %p119 = por %p117, %p118
      %p120 = scmp.ne.s32.totalorder %s112, %s114
      %p121 = scmp.eq.s32.totalorder %s31, 1
      %p122 = por %p120, %p121
      %p123 = scmp.ne.s32.totalorder %s114, %s115
      %p124 = scmp.eq.s32.totalorder %s31, 0
      %p125 = por %p123, %p124
      %p126 = scmp.ne.s32.totalorder %s114, %s115
      %p127 = scmp.eq.s32.totalorder %s32, 1
      %p128 = por %p126, %p127
      %p130 = scmp.ne.s32.totalorder %s115, %s129
      %p131 = scmp.eq.s32.totalorder %s32, 0
      %p132 = por %p130, %p131
      %s134 = sadd.s32 %s133, 1
      %p137 = scmp.eq.s32.totalorder %s26, 1
      %p138 = scmp.ne.s32.totalorder %s133, %s135
      %p139 = scmp.eq.s32.totalorder %s26, 0
      %p140 = por %p138, %p139
      %p141 = scmp.ne.s32.totalorder %s133, %s135
      %p142 = scmp.eq.s32.totalorder %s31, 1
      %p143 = por %p141, %p142
      %p144 = scmp.ne.s32.totalorder %s135, %s136
      %p145 = scmp.eq.s32.totalorder %s31, 0
      %p146 = por %p144, %p145
      %p147 = scmp.ne.s32.totalorder %s135, %s136
      %p148 = scmp.eq.s32.totalorder %s32, 1
      %p149 = por %p147, %p148
      %p151 = scmp.ne.s32.totalorder %s136, %s150
      %p152 = scmp.eq.s32.totalorder %s32, 0
      %p153 = por %p151, %p152
      %s155 = sadd.s32 %s154, 1
      %p158 = scmp.eq.s32.totalorder %s26, 1
      %p159 = scmp.ne.s32.totalorder %s154, %s156
      %p160 = scmp.eq.s32.totalorder %s26, 0
      %p161 = por %p159, %p160
      %p162 = scmp.ne.s32.totalorder %s154, %s156
      %p163 = scmp.eq.s32.totalorder %s31, 1
      %p164 = por %p162, %p163
      %p165 = scmp.ne.s32.totalorder %s156, %s157
      %p166 = scmp.eq.s32.totalorder %s31, 0
      %p167 = por %p165, %p166
      %p168 = scmp.ne.s32.totalorder %s156, %s157
      %p169 = scmp.eq.s32.totalorder %s32, 1
      %p170 = por %p168, %p169
      %p172 = scmp.ne.s32.totalorder %s157, %s171
      %p173 = scmp.eq.s32.totalorder %s32, 0
      %p174 = por %p172, %p173
      %s176 = sadd.s32 %s175, 1
      %p179 = scmp.eq.s32.totalorder %s26, 1
      %p180 = scmp.ne.s32.totalorder %s175, %s177
      %p181 = scmp.eq.s32.totalorder %s26, 0
      %p182 = por %p180, %p181
      %p183 = scmp.ne.s32.totalorder %s175, %s177
      %p184 = scmp.eq.s32.totalorder %s31, 1
      %p185 = por %p183, %p184
      %p186 = scmp.ne.s32.totalorder %s177, %s178
      %p187 = scmp.eq.s32.totalorder %s31, 0
      %p188 = por %p186, %p187
      %p189 = scmp.ne.s32.totalorder %s177, %s178
      %p190 = scmp.eq.s32.totalorder %s32, 1
      %p191 = por %p189, %p190
      %p193 = scmp.ne.s32.totalorder %s178, %s192
      %p194 = scmp.eq.s32.totalorder %s32, 0
      %p195 = por %p193, %p194
      %s196 = ssub.s32 %s26, %s33
      %p197 = scmp.eq.s32.totalorder %s196, 0
      %s199 = sadd.s32 %s198, 1
      %s200 = scalar_select %p197, %s198, %s199
      %p203 = pneg %p197
      %p204 = scmp.eq.s32.totalorder %s26, 1
      %p205 = por %p203, %p204
      %p206 = scmp.ne.s32.totalorder %s198, %s201
      %p207 = scmp.eq.s32.totalorder %s26, 0
      %p208 = por %p206, %p207
      %p209 = scmp.ne.s32.totalorder %s198, %s201
      %p210 = scmp.eq.s32.totalorder %s31, 1
      %p211 = por %p209, %p210
      %p212 = scmp.ne.s32.totalorder %s201, %s202
      %p213 = scmp.eq.s32.totalorder %s31, 0
      %p214 = por %p212, %p213
      %p215 = scmp.ne.s32.totalorder %s201, %s202
      %p216 = scmp.eq.s32.totalorder %s32, 1
      %p217 = por %p215, %p216
      %p219 = scmp.ne.s32.totalorder %s202, %s218
      %p220 = scmp.eq.s32.totalorder %s32, 0
      %p221 = por %p219, %p220
      %p222 = scmp.le.s32.totalorder 1, %s26
      %p223 = scmp.lt.s32.totalorder %s26, 3
      %p224 = pnand %p222, %p223
      %p225 = pneg %p224
      // Predicated region
      $region9: #{tpu_custom_call.1} parent=5 // pred_check
        _
      $region10: #{tpu_custom_call.1} parent=5 // pred_check_branch
        %227 = sbr.rel (%p224) target = $region12
      $region11: #{tpu_custom_call.1} parent=5 // pred_region
        %s228 = ssub.s32 %s26, 1
        // Predicated region
        $region13: #{tpu_custom_call.1} parent=11 // pred_check
          %p229 = pneg %p125
        $region14: #{tpu_custom_call.1} parent=11 // pred_check_branch
          %231 = sbr.rel (%p229) target = $region16
        $region15: #{tpu_custom_call.1} parent=11 // pred_region
          _
        $region16: #{tpu_custom_call.1} parent=11 // pred_fallthru
          _
        // Predicated region
        $region17: #{tpu_custom_call.1} parent=11 // pred_check
          %p232 = pneg %p146
        $region18: #{tpu_custom_call.1} parent=11 // pred_check_branch
          %234 = sbr.rel (%p232) target = $region20
        $region19: #{tpu_custom_call.1} parent=11 // pred_region
          _
        $region20: #{tpu_custom_call.1} parent=11 // pred_fallthru
          _
        // Predicated region
        $region21: #{tpu_custom_call.1} parent=11 // pred_check
          %p235 = pneg %p167
        $region22: #{tpu_custom_call.1} parent=11 // pred_check_branch
          %237 = sbr.rel (%p235) target = $region24
        $region23: #{tpu_custom_call.1} parent=11 // pred_region
          _
        $region24: #{tpu_custom_call.1} parent=11 // pred_fallthru
          _
        // Predicated region
        $region25: #{tpu_custom_call.1} parent=11 // pred_check
          %p238 = pneg %p188
        $region26: #{tpu_custom_call.1} parent=11 // pred_check_branch
          %240 = sbr.rel (%p238) target = $region28
        $region27: #{tpu_custom_call.1} parent=11 // pred_region
          _
        $region28: #{tpu_custom_call.1} parent=11 // pred_fallthru
          _
      $region12: #{tpu_custom_call.1} parent=5 // pred_fallthru
        _
      %p241 = scmp.lt.s32.totalorder %s26, 2
      // Predicated region
      $region29: #{tpu_custom_call.1} parent=5 // pred_check
        %p242 = pneg %p241
      $region30: #{tpu_custom_call.1} parent=5 // pred_check_branch
        %244 = sbr.rel (%p242) target = $region32
      $region31: #{tpu_custom_call.1} parent=5 // pred_region
        // Predicated region
        $region33: #{tpu_custom_call.1} parent=31 // pred_check
          %p245 = pneg %p46
        $region34: #{tpu_custom_call.1} parent=31 // pred_check_branch
          %247 = sbr.rel (%p245) target = $region36
        $region35: #{tpu_custom_call.1} parent=31 // pred_region
          %s248 = sand.u32 %s36, 1
          %s249 = scalar_lea.sflag [#allocation5], %s248
          %s250 = sand.u32 %s36, 1
          %s251 = smul.addr %s250, 128
          %s252 = scalar_lea.vmem [#allocation4], %s251
          %s253 = smul.u32 8, %s26
          %s255 = ssub.s32 2048, 2048
          %256 = vsyncadd %s249, %s255
          %s257 = smul.addr %s253, 2
          %s258 = smul.addr %s257, 128
          %s259 = scalar_lea.hbm %s0, %s258
          %s260 = sshll.u32 %s252, 4
          %s261 = int_to_ptr.vmem [resolvable:$true] %s260
          %266 = dma.hbm_to_vmem [thread:$0]  %s259, 2048, %s261, %s249, 128, 128, 8
        $region36: #{tpu_custom_call.1} parent=31 // pred_fallthru
          _
        // Predicated region
        $region37: #{tpu_custom_call.1} parent=31 // pred_check
          %p267 = pneg %p72
        $region38: #{tpu_custom_call.1} parent=31 // pred_check_branch
          %269 = sbr.rel (%p267) target = $region40
        $region39: #{tpu_custom_call.1} parent=31 // pred_region
          %p270 = scmp.lt.s32.totalorder %s26, 1
          %s271 = scalar_select %p270, %s26, 1
          %s272 = smul.addr %s271, 8
          %s273 = scalar_lea.vmem %s1, %s272
        $region40: #{tpu_custom_call.1} parent=31 // pred_fallthru
          _
        // Predicated region
        $region41: #{tpu_custom_call.1} parent=31 // pred_check
          %p274 = pneg %p98
        $region42: #{tpu_custom_call.1} parent=31 // pred_check_branch
          %276 = sbr.rel (%p274) target = $region44
        $region43: #{tpu_custom_call.1} parent=31 // pred_region
          %s277 = sand.u32 %s88, 1
          %s278 = scalar_lea.sflag [#allocation8], %s277
          %s279 = sand.u32 %s88, 1
          %s280 = smul.addr %s279, 64
          %s281 = scalar_lea.vmem [#allocation7], %s280
          %s282 = smul.u32 8, %s26
          %s284 = ssub.s32 1024, 1024
          %285 = vsyncadd %s278, %s284
          %s286 = smul.addr %s282, 128
          %s287 = scalar_lea.hbm %s2, %s286
          %s288 = sshll.u32 %s281, 4
          %s289 = int_to_ptr.vmem [resolvable:$true] %s288
          %294 = dma.hbm_to_vmem [thread:$0]  %s287, 1024, %s289, %s278, 128, 128, 8
        $region44: #{tpu_custom_call.1} parent=31 // pred_fallthru
          _
      $region32: #{tpu_custom_call.1} parent=5 // pred_fallthru
        _
      %p295 = scmp.le.s32.totalorder 1, %s26
      %p296 = scmp.lt.s32.totalorder %s26, 3
      %p297 = pnand %p295, %p296
      %p298 = pneg %p297
      // Predicated region
      $region45: #{tpu_custom_call.1} parent=5 // pred_check
        _
      $region46: #{tpu_custom_call.1} parent=5 // pred_check_branch
        %300 = sbr.rel (%p297) target = $region48
      $region47: #{tpu_custom_call.1} parent=5 // pred_region
        %s301 = ssub.s32 %s26, 1
        %s302 = sand.u32 %s39, 1
        %s303 = scalar_lea.sflag [#allocation5], %s302
        %s304 = sand.u32 %s39, 1
        %s305 = smul.addr %s304, 128
        %s306 = scalar_lea.vmem [#allocation4], %s305
        // Predicated region
        $region49: #{tpu_custom_call.1} parent=47 // pred_check
          %p307 = pneg %p52
        $region50: #{tpu_custom_call.1} parent=47 // pred_check_branch
          %309 = sbr.rel (%p307) target = $region52
        $region51: #{tpu_custom_call.1} parent=47 // pred_region
          %310 = dma.done %s303, 2048
        $region52: #{tpu_custom_call.1} parent=47 // pred_fallthru
          _
        %s311 = sand.u32 %s91, 1
        %s312 = scalar_lea.sflag [#allocation8], %s311
        %s313 = sand.u32 %s91, 1
        %s314 = smul.addr %s313, 64
        %s315 = scalar_lea.vmem [#allocation7], %s314
        // Predicated region
        $region53: #{tpu_custom_call.1} parent=47 // pred_check
          %p316 = pneg %p104
        $region54: #{tpu_custom_call.1} parent=47 // pred_check_branch
          %318 = sbr.rel (%p316) target = $region56
        $region55: #{tpu_custom_call.1} parent=47 // pred_region
          %319 = dma.done %s312, 1024
        $region56: #{tpu_custom_call.1} parent=47 // pred_fallthru
          _
        %s320 = sand.u32 %s39, 1
        %s321 = scalar_lea.sflag [#allocation5], %s320
        %s322 = sand.u32 %s39, 1
        %s323 = smul.addr %s322, 128
        %s324 = scalar_lea.vmem [#allocation4], %s323
        %p325 = pneg %p52
        %p326 = pneg %p49
        %p327 = scmp.lt.s32.totalorder %s31, 1
        %s328 = scalar_select %p327, %s31, 1
        %s329 = smul.addr %s328, 8
        %s330 = scalar_lea.vmem %s1, %s329
        %p331 = pneg %p78
        %p332 = pneg %p75
        %s333 = sand.u32 %s91, 1
        %s334 = scalar_lea.sflag [#allocation8], %s333
        %s335 = sand.u32 %s91, 1
        %s336 = smul.addr %s335, 64
        %s337 = scalar_lea.vmem [#allocation7], %s336
        %p338 = pneg %p104
        %p339 = pneg %p101
        %p340 = pneg %p125
        %p341 = pneg %p122
        %p342 = pneg %p146
        %p343 = pneg %p143
        %p344 = pneg %p167
        %p345 = pneg %p164
        %p346 = pneg %p188
        %p347 = pneg %p185
        %p348 = pneg %p214
        %p349 = pneg %p211
        %s350 = sand.u32 %s201, 1
        %s351 = scalar_lea.sflag [#allocation6], %s350
        %s352 = sand.u32 %s201, 1
        %s353 = smul.addr %s352, 8
        %s354 = scalar_lea.vmem [#allocation9], %s353
        %s355 = smul.u32 8, %s31
        %p356 = scmp.lt.s32.totalorder %s31, 1
        %s357 = scalar_select %p356, %s31, 1
        %s358 = smul.addr %s357, 8
        %s359 = scalar_lea.vmem %s1, %s358
        %s360 = smul.u32 8, %s31
        %v361 = vld [vmem:[%s306] sm:$0xff]
        %v362 = vld [vmem:[%s306 + $0x8] sm:$0xff]
        %v363 = vld [vmem:[%s306 + $0x10] sm:$0xff]
        %v364 = vld [vmem:[%s306 + $0x18] sm:$0xff]
        %v365 = vld [vmem:[%s306 + $0x20] sm:$0xff]
        %v366 = vld [vmem:[%s306 + $0x28] sm:$0xff]
        %v367 = vld [vmem:[%s306 + $0x30] sm:$0xff]
        %v368 = vld [vmem:[%s306 + $0x38] sm:$0xff]
        %v369 = vld [vmem:[%s306 + $0x40] sm:$0xff]
        %v370 = vld [vmem:[%s306 + $0x48] sm:$0xff]
        %v371 = vld [vmem:[%s306 + $0x50] sm:$0xff]
        %v372 = vld [vmem:[%s306 + $0x58] sm:$0xff]
        %v373 = vld [vmem:[%s306 + $0x60] sm:$0xff]
        %v374 = vld [vmem:[%s306 + $0x68] sm:$0xff]
        %v375 = vld [vmem:[%s306 + $0x70] sm:$0xff]
        %v376 = vld [vmem:[%s306 + $0x78] sm:$0xff]
        %v377 = vld [vmem:[%s315] sm:$0xff]
        %v378 = vld [vmem:[%s315 + $0x8] sm:$0xff]
        %v379 = vld [vmem:[%s315 + $0x10] sm:$0xff]
        %v380 = vld [vmem:[%s315 + $0x18] sm:$0xff]
        %v381 = vld [vmem:[%s315 + $0x20] sm:$0xff]
        %v382 = vld [vmem:[%s315 + $0x28] sm:$0xff]
        %v383 = vld [vmem:[%s315 + $0x30] sm:$0xff]
        %v384 = vld [vmem:[%s315 + $0x38] sm:$0xff]
        %v385 = vld [vmem:[%s359] sm:$0xff]
        %v386 = vld [vmem:[%s3] sm:$0x1]
        %v387 = vld [vmem:[#allocation2] sm:$0x1]
        %v388 = vld [vmem:[%s5] sm:$0x1]
        %v389 = vld [vmem:[#allocation3] sm:$0x1]
        %v391 = vlaneseq
        %v392 = vshrl.u32 %v391, 7
        %v393 = vsub.s32 0, %v392
        %v394 = vrot.slane %v386, %v393
        %v396 = vmul.f32 %v361, %v394
        %v397 = vmul.f32 %v362, %v394
        %v398 = vmul.f32 %v363, %v394
        %v399 = vmul.f32 %v364, %v394
        %v400 = vmul.f32 %v365, %v394
        %v401 = vmul.f32 %v366, %v394
        %v402 = vmul.f32 %v367, %v394
        %v403 = vmul.f32 %v368, %v394
        %v404 = vmul.f32 %v369, %v394
        %v405 = vmul.f32 %v370, %v394
        %v406 = vmul.f32 %v371, %v394
        %v407 = vmul.f32 %v372, %v394
        %v408 = vmul.f32 %v373, %v394
        %v409 = vmul.f32 %v374, %v394
        %v410 = vmul.f32 %v375, %v394
        %v411 = vmul.f32 %v376, %v394
        %vm412 = vcmask 523264
        %v413 = vsel %vm412, %v396, 0.0
        %414 = vadd.xlane.f32.xlu0 %v413
        %v415 = vpop.xlane.xlu0 %414
        %v416 = vsel %vm412, %v397, 0.0
        %417 = vadd.xlane.f32.xlu0 %v416
        %v418 = vpop.xlane.xlu0 %417
        %v419 = vsel %vm412, %v398, 0.0
        %420 = vadd.xlane.f32.xlu0 %v419
        %v421 = vpop.xlane.xlu0 %420
        %v422 = vsel %vm412, %v399, 0.0
        %423 = vadd.xlane.f32.xlu0 %v422
        %v424 = vpop.xlane.xlu0 %423
        %v425 = vsel %vm412, %v400, 0.0
        %426 = vadd.xlane.f32.xlu0 %v425
        %v427 = vpop.xlane.xlu0 %426
        %v428 = vsel %vm412, %v401, 0.0
        %429 = vadd.xlane.f32.xlu0 %v428
        %v430 = vpop.xlane.xlu0 %429
        %v431 = vsel %vm412, %v402, 0.0
        %432 = vadd.xlane.f32.xlu0 %v431
        %v433 = vpop.xlane.xlu0 %432
        %v434 = vsel %vm412, %v403, 0.0
        %435 = vadd.xlane.f32.xlu0 %v434
        %v436 = vpop.xlane.xlu0 %435
        %v437 = vsel %vm412, %v404, 0.0
        %438 = vadd.xlane.f32.xlu0 %v437
        %v439 = vpop.xlane.xlu0 %438
        %v440 = vsel %vm412, %v405, 0.0
        %441 = vadd.xlane.f32.xlu0 %v440
        %v442 = vpop.xlane.xlu0 %441
        %v443 = vsel %vm412, %v406, 0.0
        %444 = vadd.xlane.f32.xlu0 %v443
        %v445 = vpop.xlane.xlu0 %444
        %v446 = vsel %vm412, %v407, 0.0
        %447 = vadd.xlane.f32.xlu0 %v446
        %v448 = vpop.xlane.xlu0 %447
        %v449 = vsel %vm412, %v408, 0.0
        %450 = vadd.xlane.f32.xlu0 %v449
        %v451 = vpop.xlane.xlu0 %450
        %v452 = vsel %vm412, %v409, 0.0
        %453 = vadd.xlane.f32.xlu0 %v452
        %v454 = vpop.xlane.xlu0 %453
        %v455 = vsel %vm412, %v410, 0.0
        %456 = vadd.xlane.f32.xlu0 %v455
        %v457 = vpop.xlane.xlu0 %456
        %v458 = vsel %vm412, %v411, 0.0
        %459 = vadd.xlane.f32.xlu0 %v458
        %v460 = vpop.xlane.xlu0 %459
        %v462 = vlaneseq
        %v463 = vshrl.u32 %v462, 7
        %v464 = vsub.s32 0, %v463
        %v465 = vrot.slane %v387, %v464
        %v467 = vadd.f32 %v415, %v465
        %v468 = vadd.f32 %v418, %v465
        %v469 = vadd.f32 %v421, %v465
        %v470 = vadd.f32 %v424, %v465
        %v471 = vadd.f32 %v427, %v465
        %v472 = vadd.f32 %v430, %v465
        %v473 = vadd.f32 %v433, %v465
        %v474 = vadd.f32 %v436, %v465
        %v475 = vadd.f32 %v439, %v465
        %v476 = vadd.f32 %v442, %v465
        %v477 = vadd.f32 %v445, %v465
        %v478 = vadd.f32 %v448, %v465
        %v479 = vadd.f32 %v451, %v465
        %v480 = vadd.f32 %v454, %v465
        %v481 = vadd.f32 %v457, %v465
        %v482 = vadd.f32 %v460, %v465
        %v483 = vlaneseq
        %v484 = vshrl.u32 %v483, 7
        %v485 = vadd.s32 %v484, 8
        %v486 = vcombine.high %v385, %v385
        %v488 = vunpack.c.l.s4 1966171168
        %v489 = vunpack.c.0.s8 %v488
        %v490 = vlaneseq
        %v491 = vshrl.u32 %v490, 7
        %v492 = vsub.s32 %v489, %v491
        %v493 = vrot.slane %v385, %v492
        %v495 = vunpack.c.l.s4 1966171168
        %v496 = vunpack.c.0.s8 %v495
        %v497 = vlaneseq
        %v498 = vshrl.u32 %v497, 7
        %v499 = vsub.s32 %v496, %v498
        %v500 = vrot.slane %v486, %v499
        %v501 = vcombine.high %v493, %v493
        %v502 = vcombine.high %v500, %v500
        %v504 = vunpack.c.l.s4 1966171168
        %v505 = vunpack.c.0.s8 %v504
        %v506 = vlaneseq
        %v507 = vshrl.u32 %v506, 7
        %v508 = vsub.s32 %v505, %v507
        %v509 = vrot.slane %v493, %v508
        %v511 = vunpack.c.l.s4 1966171168
        %v512 = vunpack.c.0.s8 %v511
        %v513 = vlaneseq
        %v514 = vshrl.u32 %v513, 7
        %v515 = vsub.s32 %v512, %v514
        %v516 = vrot.slane %v500, %v515
        %v518 = vunpack.c.l.s4 1966171168
        %v519 = vunpack.c.0.s8 %v518
        %v520 = vlaneseq
        %v521 = vshrl.u32 %v520, 7
        %v522 = vsub.s32 %v519, %v521
        %v523 = vrot.slane %v501, %v522
        %v525 = vunpack.c.l.s4 1966171168
        %v526 = vunpack.c.0.s8 %v525
        %v527 = vlaneseq
        %v528 = vshrl.u32 %v527, 7
        %v529 = vsub.s32 %v526, %v528
        %v530 = vrot.slane %v502, %v529
        %v531 = vcombine.high %v509, %v509
        %v532 = vcombine.high %v516, %v516
        %v533 = vcombine.high %v523, %v523
        %v534 = vcombine.high %v530, %v530
        %v535 = vlaneseq
        %v536 = vshrl.u32 %v535, 7
        %v537 = vsub.s32 0, %v536
        %v538 = vrot.slane %v509, %v537
        %v539 = vlaneseq
        %v540 = vshrl.u32 %v539, 7
        %v541 = vsub.s32 0, %v540
        %v542 = vrot.slane %v523, %v541
        %v543 = vlaneseq
        %v544 = vshrl.u32 %v543, 7
        %v545 = vsub.s32 0, %v544
        %v546 = vrot.slane %v531, %v545
        %v547 = vlaneseq
        %v548 = vshrl.u32 %v547, 7
        %v549 = vsub.s32 0, %v548
        %v550 = vrot.slane %v533, %v549
        %v551 = vlaneseq
        %v552 = vshrl.u32 %v551, 7
        %v553 = vsub.s32 0, %v552
        %v554 = vrot.slane %v516, %v553
        %v555 = vlaneseq
        %v556 = vshrl.u32 %v555, 7
        %v557 = vsub.s32 0, %v556
        %v558 = vrot.slane %v530, %v557
        %v559 = vlaneseq
        %v560 = vshrl.u32 %v559, 7
        %v561 = vsub.s32 0, %v560
        %v562 = vrot.slane %v532, %v561
        %v563 = vlaneseq
        %v564 = vshrl.u32 %v563, 7
        %v565 = vsub.s32 0, %v564
        %v566 = vrot.slane %v534, %v565
        %vm567 = vcmp.lt.s32.totalorder %v484, %v538
        %vm568 = vcmp.lt.s32.totalorder %v485, %v538
        %vm569 = vcmp.lt.s32.totalorder %v484, %v542
        %vm570 = vcmp.lt.s32.totalorder %v485, %v542
        %vm571 = vcmp.lt.s32.totalorder %v484, %v546
        %vm572 = vcmp.lt.s32.totalorder %v485, %v546
        %vm573 = vcmp.lt.s32.totalorder %v484, %v550
        %vm574 = vcmp.lt.s32.totalorder %v485, %v550
        %vm575 = vcmp.lt.s32.totalorder %v484, %v554
        %vm576 = vcmp.lt.s32.totalorder %v485, %v554
        %vm577 = vcmp.lt.s32.totalorder %v484, %v558
        %vm578 = vcmp.lt.s32.totalorder %v485, %v558
        %vm579 = vcmp.lt.s32.totalorder %v484, %v562
        %vm580 = vcmp.lt.s32.totalorder %v485, %v562
        %vm581 = vcmp.lt.s32.totalorder %v484, %v566
        %vm582 = vcmp.lt.s32.totalorder %v485, %v566
        %v583 = vsel %vm567, %v467, -1e+30
        %v584 = vsel %vm568, %v468, -1e+30
        %v585 = vsel %vm569, %v469, -1e+30
        %v586 = vsel %vm570, %v470, -1e+30
        %v587 = vsel %vm571, %v471, -1e+30
        %v588 = vsel %vm572, %v472, -1e+30
        %v589 = vsel %vm573, %v473, -1e+30
        %v590 = vsel %vm574, %v474, -1e+30
        %v591 = vsel %vm575, %v475, -1e+30
        %v592 = vsel %vm576, %v476, -1e+30
        %v593 = vsel %vm577, %v477, -1e+30
        %v594 = vsel %vm578, %v478, -1e+30
        %v595 = vsel %vm579, %v479, -1e+30
        %v596 = vsel %vm580, %v480, -1e+30
        %v597 = vsel %vm581, %v481, -1e+30
        %v598 = vsel %vm582, %v482, -1e+30
        %vm599 = vcmask 7168
        %v600 = vsel %vm599, %v583, -inf
        %v601 = vsel %vm599, %v584, -inf
        %v602 = vmax.f32 %v600, %v601
        %v603 = vrot.slane %v602, 4
        %v604 = vmax.f32 %v602, %v603
        %v605 = vrot.slane %v604, 2
        %v606 = vmax.f32 %v604, %v605
        %v607 = vrot.slane %v606, 1
        %v608 = vmax.f32 %v606, %v607
        %v609 = vsel %vm599, %v585, -inf
        %v610 = vsel %vm599, %v586, -inf
        %v611 = vmax.f32 %v609, %v610
        %v612 = vrot.slane %v611, 4
        %v613 = vmax.f32 %v611, %v612
        %v614 = vrot.slane %v613, 2
        %v615 = vmax.f32 %v613, %v614
        %v616 = vrot.slane %v615, 1
        %v617 = vmax.f32 %v615, %v616
        %v618 = vsel %vm599, %v587, -inf
        %v619 = vsel %vm599, %v588, -inf
        %v620 = vmax.f32 %v618, %v619
        %v621 = vrot.slane %v620, 4
        %v622 = vmax.f32 %v620, %v621
        %v623 = vrot.slane %v622, 2
        %v624 = vmax.f32 %v622, %v623
        %v625 = vrot.slane %v624, 1
        %v626 = vmax.f32 %v624, %v625
        %v627 = vsel %vm599, %v589, -inf
        %v628 = vsel %vm599, %v590, -inf
        %v629 = vmax.f32 %v627, %v628
        %v630 = vrot.slane %v629, 4
        %v631 = vmax.f32 %v629, %v630
        %v632 = vrot.slane %v631, 2
        %v633 = vmax.f32 %v631, %v632
        %v634 = vrot.slane %v633, 1
        %v635 = vmax.f32 %v633, %v634
        %v636 = vsel %vm599, %v591, -inf
        %v637 = vsel %vm599, %v592, -inf
        %v638 = vmax.f32 %v636, %v637
        %v639 = vrot.slane %v638, 4
        %v640 = vmax.f32 %v638, %v639
        %v641 = vrot.slane %v640, 2
        %v642 = vmax.f32 %v640, %v641
        %v643 = vrot.slane %v642, 1
        %v644 = vmax.f32 %v642, %v643
        %v645 = vsel %vm599, %v593, -inf
        %v646 = vsel %vm599, %v594, -inf
        %v647 = vmax.f32 %v645, %v646
        %v648 = vrot.slane %v647, 4
        %v649 = vmax.f32 %v647, %v648
        %v650 = vrot.slane %v649, 2
        %v651 = vmax.f32 %v649, %v650
        %v652 = vrot.slane %v651, 1
        %v653 = vmax.f32 %v651, %v652
        %v654 = vsel %vm599, %v595, -inf
        %v655 = vsel %vm599, %v596, -inf
        %v656 = vmax.f32 %v654, %v655
        %v657 = vrot.slane %v656, 4
        %v658 = vmax.f32 %v656, %v657
        %v659 = vrot.slane %v658, 2
        %v660 = vmax.f32 %v658, %v659
        %v661 = vrot.slane %v660, 1
        %v662 = vmax.f32 %v660, %v661
        %v663 = vsel %vm599, %v597, -inf
        %v664 = vsel %vm599, %v598, -inf
        %v665 = vmax.f32 %v663, %v664
        %v666 = vrot.slane %v665, 4
        %v667 = vmax.f32 %v665, %v666
        %v668 = vrot.slane %v667, 2
        %v669 = vmax.f32 %v667, %v668
        %v670 = vrot.slane %v669, 1
        %v671 = vmax.f32 %v669, %v670
        %v672 = vsub.f32 %v583, %v608
        %v673 = vsub.f32 %v584, %v608
        %v674 = vsub.f32 %v585, %v617
        %v675 = vsub.f32 %v586, %v617
        %v676 = vsub.f32 %v587, %v626
        %v677 = vsub.f32 %v588, %v626
        %v678 = vsub.f32 %v589, %v635
        %v679 = vsub.f32 %v590, %v635
        %v680 = vsub.f32 %v591, %v644
        %v681 = vsub.f32 %v592, %v644
        %v682 = vsub.f32 %v593, %v653
        %v683 = vsub.f32 %v594, %v653
        %v684 = vsub.f32 %v595, %v662
        %v685 = vsub.f32 %v596, %v662
        %v686 = vsub.f32 %v597, %v671
        %v687 = vsub.f32 %v598, %v671
        %v688 = vmul.f32 %v672, 1.442695
        %v689 = vpow.pop %v688
        %v690 = vmul.f32 %v673, 1.442695
        %v691 = vpow.pop %v690
        %v692 = vmul.f32 %v674, 1.442695
        %v693 = vpow.pop %v692
        %v694 = vmul.f32 %v675, 1.442695
        %v695 = vpow.pop %v694
        %v696 = vmul.f32 %v676, 1.442695
        %v697 = vpow.pop %v696
        %v698 = vmul.f32 %v677, 1.442695
        %v699 = vpow.pop %v698
        %v700 = vmul.f32 %v678, 1.442695
        %v701 = vpow.pop %v700
        %v702 = vmul.f32 %v679, 1.442695
        %v703 = vpow.pop %v702
        %v704 = vmul.f32 %v680, 1.442695
        %v705 = vpow.pop %v704
        %v706 = vmul.f32 %v681, 1.442695
        %v707 = vpow.pop %v706
        %v708 = vmul.f32 %v682, 1.442695
        %v709 = vpow.pop %v708
        %v710 = vmul.f32 %v683, 1.442695
        %v711 = vpow.pop %v710
        %v712 = vmul.f32 %v684, 1.442695
        %v713 = vpow.pop %v712
        %v714 = vmul.f32 %v685, 1.442695
        %v715 = vpow.pop %v714
        %v716 = vmul.f32 %v686, 1.442695
        %v717 = vpow.pop %v716
        %v718 = vmul.f32 %v687, 1.442695
        %v719 = vpow.pop %v718
        %v720 = vsel %vm567, %v689, 0.0
        %v721 = vsel %vm568, %v691, 0.0
        %v722 = vsel %vm569, %v693, 0.0
        %v723 = vsel %vm570, %v695, 0.0
        %v724 = vsel %vm571, %v697, 0.0
        %v725 = vsel %vm572, %v699, 0.0
        %v726 = vsel %vm573, %v701, 0.0
        %v727 = vsel %vm574, %v703, 0.0
        %v728 = vsel %vm575, %v705, 0.0
        %v729 = vsel %vm576, %v707, 0.0
        %v730 = vsel %vm577, %v709, 0.0
        %v731 = vsel %vm578, %v711, 0.0
        %v732 = vsel %vm579, %v713, 0.0
        %v733 = vsel %vm580, %v715, 0.0
        %v734 = vsel %vm581, %v717, 0.0
        %v735 = vsel %vm582, %v719, 0.0
        %v736 = vsel %vm599, %v720, 0.0
        %v737 = vsel %vm599, %v721, 0.0
        %v738 = vadd.f32 %v736, %v737
        %v739 = vrot.slane %v738, 4
        %v740 = vadd.f32 %v738, %v739
        %v741 = vrot.slane %v740, 2
        %v742 = vadd.f32 %v740, %v741
        %v743 = vrot.slane %v742, 1
        %v744 = vadd.f32 %v742, %v743
        %v745 = vsel %vm599, %v722, 0.0
        %v746 = vsel %vm599, %v723, 0.0
        %v747 = vadd.f32 %v745, %v746
        %v748 = vrot.slane %v747, 4
        %v749 = vadd.f32 %v747, %v748
        %v750 = vrot.slane %v749, 2
        %v751 = vadd.f32 %v749, %v750
        %v752 = vrot.slane %v751, 1
        %v753 = vadd.f32 %v751, %v752
        %v754 = vsel %vm599, %v724, 0.0
        %v755 = vsel %vm599, %v725, 0.0
        %v756 = vadd.f32 %v754, %v755
        %v757 = vrot.slane %v756, 4
        %v758 = vadd.f32 %v756, %v757
        %v759 = vrot.slane %v758, 2
        %v760 = vadd.f32 %v758, %v759
        %v761 = vrot.slane %v760, 1
        %v762 = vadd.f32 %v760, %v761
        %v763 = vsel %vm599, %v726, 0.0
        %v764 = vsel %vm599, %v727, 0.0
        %v765 = vadd.f32 %v763, %v764
        %v766 = vrot.slane %v765, 4
        %v767 = vadd.f32 %v765, %v766
        %v768 = vrot.slane %v767, 2
        %v769 = vadd.f32 %v767, %v768
        %v770 = vrot.slane %v769, 1
        %v771 = vadd.f32 %v769, %v770
        %v772 = vsel %vm599, %v728, 0.0
        %v773 = vsel %vm599, %v729, 0.0
        %v774 = vadd.f32 %v772, %v773
        %v775 = vrot.slane %v774, 4
        %v776 = vadd.f32 %v774, %v775
        %v777 = vrot.slane %v776, 2
        %v778 = vadd.f32 %v776, %v777
        %v779 = vrot.slane %v778, 1
        %v780 = vadd.f32 %v778, %v779
        %v781 = vsel %vm599, %v730, 0.0
        %v782 = vsel %vm599, %v731, 0.0
        %v783 = vadd.f32 %v781, %v782
        %v784 = vrot.slane %v783, 4
        %v785 = vadd.f32 %v783, %v784
        %v786 = vrot.slane %v785, 2
        %v787 = vadd.f32 %v785, %v786
        %v788 = vrot.slane %v787, 1
        %v789 = vadd.f32 %v787, %v788
        %v790 = vsel %vm599, %v732, 0.0
        %v791 = vsel %vm599, %v733, 0.0
        %v792 = vadd.f32 %v790, %v791
        %v793 = vrot.slane %v792, 4
        %v794 = vadd.f32 %v792, %v793
        %v795 = vrot.slane %v794, 2
        %v796 = vadd.f32 %v794, %v795
        %v797 = vrot.slane %v796, 1
        %v798 = vadd.f32 %v796, %v797
        %v799 = vsel %vm599, %v734, 0.0
        %v800 = vsel %vm599, %v735, 0.0
        %v801 = vadd.f32 %v799, %v800
        %v802 = vrot.slane %v801, 4
        %v803 = vadd.f32 %v801, %v802
        %v804 = vrot.slane %v803, 2
        %v805 = vadd.f32 %v803, %v804
        %v806 = vrot.slane %v805, 1
        %v807 = vadd.f32 %v805, %v806
        %v808 = vrcp.pop %v744
        %v809 = vrcp.pop %v753
        %v810 = vrcp.pop %v762
        %v811 = vrcp.pop %v771
        %v812 = vrcp.pop %v780
        %v813 = vrcp.pop %v789
        %v814 = vrcp.pop %v798
        %v815 = vrcp.pop %v807
        %v816 = vmul.f32 %v720, %v808
        %v817 = vmul.f32 %v721, %v808
        %v818 = vmul.f32 %v722, %v809
        %v819 = vmul.f32 %v723, %v809
        %v820 = vmul.f32 %v724, %v810
        %v821 = vmul.f32 %v725, %v810
        %v822 = vmul.f32 %v726, %v811
        %v823 = vmul.f32 %v727, %v811
        %v824 = vmul.f32 %v728, %v812
        %v825 = vmul.f32 %v729, %v812
        %v826 = vmul.f32 %v730, %v813
        %v827 = vmul.f32 %v731, %v813
        %v828 = vmul.f32 %v732, %v814
        %v829 = vmul.f32 %v733, %v814
        %v830 = vmul.f32 %v734, %v815
        %v831 = vmul.f32 %v735, %v815
        %833 = vset.pattern.permute.xlu0 0
        %834 = vperm.xlu0 %833, %v816
        %v835 = vpop.permute.xlu0 %834
        %838 = vset.pattern.permute.xlu0 0
        %839 = vperm.xlu0 %838, %v817
        %v840 = vpop.permute.xlu0 %839
        %843 = vset.pattern.permute.xlu0 0
        %844 = vperm.xlu0 %843, %v818
        %v845 = vpop.permute.xlu0 %844
        %848 = vset.pattern.permute.xlu0 0
        %849 = vperm.xlu0 %848, %v819
        %v850 = vpop.permute.xlu0 %849
        %853 = vset.pattern.permute.xlu0 0
        %854 = vperm.xlu0 %853, %v820
        %v855 = vpop.permute.xlu0 %854
        %858 = vset.pattern.permute.xlu0 0
        %859 = vperm.xlu0 %858, %v821
        %v860 = vpop.permute.xlu0 %859
        %863 = vset.pattern.permute.xlu0 0
        %864 = vperm.xlu0 %863, %v822
        %v865 = vpop.permute.xlu0 %864
        %868 = vset.pattern.permute.xlu0 0
        %869 = vperm.xlu0 %868, %v823
        %v870 = vpop.permute.xlu0 %869
        %873 = vset.pattern.permute.xlu0 0
        %874 = vperm.xlu0 %873, %v824
        %v875 = vpop.permute.xlu0 %874
        %878 = vset.pattern.permute.xlu0 0
        %879 = vperm.xlu0 %878, %v825
        %v880 = vpop.permute.xlu0 %879
        %883 = vset.pattern.permute.xlu0 0
        %884 = vperm.xlu0 %883, %v826
        %v885 = vpop.permute.xlu0 %884
        %888 = vset.pattern.permute.xlu0 0
        %889 = vperm.xlu0 %888, %v827
        %v890 = vpop.permute.xlu0 %889
        %893 = vset.pattern.permute.xlu0 0
        %894 = vperm.xlu0 %893, %v828
        %v895 = vpop.permute.xlu0 %894
        %898 = vset.pattern.permute.xlu0 0
        %899 = vperm.xlu0 %898, %v829
        %v900 = vpop.permute.xlu0 %899
        %903 = vset.pattern.permute.xlu0 0
        %904 = vperm.xlu0 %903, %v830
        %v905 = vpop.permute.xlu0 %904
        %908 = vset.pattern.permute.xlu0 0
        %909 = vperm.xlu0 %908, %v831
        %v910 = vpop.permute.xlu0 %909
        %v912 = vmul.f32 %v361, %v835
        %v913 = vmul.f32 %v362, %v840
        %v914 = vmul.f32 %v363, %v845
        %v915 = vmul.f32 %v364, %v850
        %v916 = vmul.f32 %v365, %v855
        %v917 = vmul.f32 %v366, %v860
        %v918 = vmul.f32 %v367, %v865
        %v919 = vmul.f32 %v368, %v870
        %v920 = vmul.f32 %v369, %v875
        %v921 = vmul.f32 %v370, %v880
        %v922 = vmul.f32 %v371, %v885
        %v923 = vmul.f32 %v372, %v890
        %v924 = vmul.f32 %v373, %v895
        %v925 = vmul.f32 %v374, %v900
        %v926 = vmul.f32 %v375, %v905
        %v927 = vmul.f32 %v376, %v910
        %v928 = vsel %vm412, %v912, 0.0
        %v929 = vsel %vm412, %v913, 0.0
        %v930 = vadd.f32 %v928, %v929
        %v931 = vrot.slane %v930, 4
        %v932 = vadd.f32 %v930, %v931
        %v933 = vrot.slane %v932, 2
        %v934 = vadd.f32 %v932, %v933
        %v935 = vrot.slane %v934, 1
        %v936 = vadd.f32 %v934, %v935
        %v937 = vsel %vm412, %v914, 0.0
        %v938 = vsel %vm412, %v915, 0.0
        %v939 = vadd.f32 %v937, %v938
        %v940 = vrot.slane %v939, 4
        %v941 = vadd.f32 %v939, %v940
        %v942 = vrot.slane %v941, 2
        %v943 = vadd.f32 %v941, %v942
        %v944 = vrot.slane %v943, 1
        %v945 = vadd.f32 %v943, %v944
        %v946 = vsel %vm412, %v916, 0.0
        %v947 = vsel %vm412, %v917, 0.0
        %v948 = vadd.f32 %v946, %v947
        %v949 = vrot.slane %v948, 4
        %v950 = vadd.f32 %v948, %v949
        %v951 = vrot.slane %v950, 2
        %v952 = vadd.f32 %v950, %v951
        %v953 = vrot.slane %v952, 1
        %v954 = vadd.f32 %v952, %v953
        %v955 = vsel %vm412, %v918, 0.0
        %v956 = vsel %vm412, %v919, 0.0
        %v957 = vadd.f32 %v955, %v956
        %v958 = vrot.slane %v957, 4
        %v959 = vadd.f32 %v957, %v958
        %v960 = vrot.slane %v959, 2
        %v961 = vadd.f32 %v959, %v960
        %v962 = vrot.slane %v961, 1
        %v963 = vadd.f32 %v961, %v962
        %v964 = vsel %vm412, %v920, 0.0
        %v965 = vsel %vm412, %v921, 0.0
        %v966 = vadd.f32 %v964, %v965
        %v967 = vrot.slane %v966, 4
        %v968 = vadd.f32 %v966, %v967
        %v969 = vrot.slane %v968, 2
        %v970 = vadd.f32 %v968, %v969
        %v971 = vrot.slane %v970, 1
        %v972 = vadd.f32 %v970, %v971
        %v973 = vsel %vm412, %v922, 0.0
        %v974 = vsel %vm412, %v923, 0.0
        %v975 = vadd.f32 %v973, %v974
        %v976 = vrot.slane %v975, 4
        %v977 = vadd.f32 %v975, %v976
        %v978 = vrot.slane %v977, 2
        %v979 = vadd.f32 %v977, %v978
        %v980 = vrot.slane %v979, 1
        %v981 = vadd.f32 %v979, %v980
        %v982 = vsel %vm412, %v924, 0.0
        %v983 = vsel %vm412, %v925, 0.0
        %v984 = vadd.f32 %v982, %v983
        %v985 = vrot.slane %v984, 4
        %v986 = vadd.f32 %v984, %v985
        %v987 = vrot.slane %v986, 2
        %v988 = vadd.f32 %v986, %v987
        %v989 = vrot.slane %v988, 1
        %v990 = vadd.f32 %v988, %v989
        %v991 = vsel %vm412, %v926, 0.0
        %v992 = vsel %vm412, %v927, 0.0
        %v993 = vadd.f32 %v991, %v992
        %v994 = vrot.slane %v993, 4
        %v995 = vadd.f32 %v993, %v994
        %v996 = vrot.slane %v995, 2
        %v997 = vadd.f32 %v995, %v996
        %v998 = vrot.slane %v997, 1
        %v999 = vadd.f32 %v997, %v998
        %v1001 = vlaneseq
        %v1002 = vshrl.u32 %v1001, 7
        %v1003 = vsub.s32 0, %v1002
        %v1004 = vrot.slane %v388, %v1003
        %v1006 = vmul.f32 %v377, %v1004
        %v1007 = vmul.f32 %v378, %v1004
        %v1008 = vmul.f32 %v379, %v1004
        %v1009 = vmul.f32 %v380, %v1004
        %v1010 = vmul.f32 %v381, %v1004
        %v1011 = vmul.f32 %v382, %v1004
        %v1012 = vmul.f32 %v383, %v1004
        %v1013 = vmul.f32 %v384, %v1004
        %v1014 = vsel %vm412, %v1006, 0.0
        %1015 = vadd.xlane.f32.xlu0 %v1014
        %v1016 = vpop.xlane.xlu0 %1015
        %v1017 = vsel %vm412, %v1007, 0.0
        %1018 = vadd.xlane.f32.xlu0 %v1017
        %v1019 = vpop.xlane.xlu0 %1018
        %v1020 = vsel %vm412, %v1008, 0.0
        %1021 = vadd.xlane.f32.xlu0 %v1020
        %v1022 = vpop.xlane.xlu0 %1021
        %v1023 = vsel %vm412, %v1009, 0.0
        %1024 = vadd.xlane.f32.xlu0 %v1023
        %v1025 = vpop.xlane.xlu0 %1024
        %v1026 = vsel %vm412, %v1010, 0.0
        %1027 = vadd.xlane.f32.xlu0 %v1026
        %v1028 = vpop.xlane.xlu0 %1027
        %v1029 = vsel %vm412, %v1011, 0.0
        %1030 = vadd.xlane.f32.xlu0 %v1029
        %v1031 = vpop.xlane.xlu0 %1030
        %v1032 = vsel %vm412, %v1012, 0.0
        %1033 = vadd.xlane.f32.xlu0 %v1032
        %v1034 = vpop.xlane.xlu0 %1033
        %v1035 = vsel %vm412, %v1013, 0.0
        %1036 = vadd.xlane.f32.xlu0 %v1035
        %v1037 = vpop.xlane.xlu0 %1036
        %v1039 = vlaneseq
        %v1040 = vshrl.u32 %v1039, 7
        %v1041 = vsub.s32 0, %v1040
        %v1042 = vrot.slane %v389, %v1041
        %v1044 = vadd.f32 %v1016, %v1042
        %v1045 = vadd.f32 %v1019, %v1042
        %v1046 = vadd.f32 %v1022, %v1042
        %v1047 = vadd.f32 %v1025, %v1042
        %v1048 = vadd.f32 %v1028, %v1042
        %v1049 = vadd.f32 %v1031, %v1042
        %v1050 = vadd.f32 %v1034, %v1042
        %v1051 = vadd.f32 %v1037, %v1042
        %v1052 = vsel %vm599, %v1044, -inf
        %v1053 = vrot.slane %v1052, 4
        %v1054 = vmax.f32 %v1052, %v1053
        %v1055 = vrot.slane %v1054, 2
        %v1056 = vmax.f32 %v1054, %v1055
        %v1057 = vrot.slane %v1056, 1
        %v1058 = vmax.f32 %v1056, %v1057
        %v1059 = vsel %vm599, %v1045, -inf
        %v1060 = vrot.slane %v1059, 4
        %v1061 = vmax.f32 %v1059, %v1060
        %v1062 = vrot.slane %v1061, 2
        %v1063 = vmax.f32 %v1061, %v1062
        %v1064 = vrot.slane %v1063, 1
        %v1065 = vmax.f32 %v1063, %v1064
        %v1066 = vsel %vm599, %v1046, -inf
        %v1067 = vrot.slane %v1066, 4
        %v1068 = vmax.f32 %v1066, %v1067
        %v1069 = vrot.slane %v1068, 2
        %v1070 = vmax.f32 %v1068, %v1069
        %v1071 = vrot.slane %v1070, 1
        %v1072 = vmax.f32 %v1070, %v1071
        %v1073 = vsel %vm599, %v1047, -inf
        %v1074 = vrot.slane %v1073, 4
        %v1075 = vmax.f32 %v1073, %v1074
        %v1076 = vrot.slane %v1075, 2
        %v1077 = vmax.f32 %v1075, %v1076
        %v1078 = vrot.slane %v1077, 1
        %v1079 = vmax.f32 %v1077, %v1078
        %v1080 = vsel %vm599, %v1048, -inf
        %v1081 = vrot.slane %v1080, 4
        %v1082 = vmax.f32 %v1080, %v1081
        %v1083 = vrot.slane %v1082, 2
        %v1084 = vmax.f32 %v1082, %v1083
        %v1085 = vrot.slane %v1084, 1
        %v1086 = vmax.f32 %v1084, %v1085
        %v1087 = vsel %vm599, %v1049, -inf
        %v1088 = vrot.slane %v1087, 4
        %v1089 = vmax.f32 %v1087, %v1088
        %v1090 = vrot.slane %v1089, 2
        %v1091 = vmax.f32 %v1089, %v1090
        %v1092 = vrot.slane %v1091, 1
        %v1093 = vmax.f32 %v1091, %v1092
        %v1094 = vsel %vm599, %v1050, -inf
        %v1095 = vrot.slane %v1094, 4
        %v1096 = vmax.f32 %v1094, %v1095
        %v1097 = vrot.slane %v1096, 2
        %v1098 = vmax.f32 %v1096, %v1097
        %v1099 = vrot.slane %v1098, 1
        %v1100 = vmax.f32 %v1098, %v1099
        %v1101 = vsel %vm599, %v1051, -inf
        %v1102 = vrot.slane %v1101, 4
        %v1103 = vmax.f32 %v1101, %v1102
        %v1104 = vrot.slane %v1103, 2
        %v1105 = vmax.f32 %v1103, %v1104
        %v1106 = vrot.slane %v1105, 1
        %v1107 = vmax.f32 %v1105, %v1106
        %v1108 = vmax.f32 %v1058, %v389
        %v1109 = vmax.f32 %v1065, %v389
        %v1110 = vmax.f32 %v1072, %v389
        %v1111 = vmax.f32 %v1079, %v389
        %v1112 = vmax.f32 %v1086, %v389
        %v1113 = vmax.f32 %v1093, %v389
        %v1114 = vmax.f32 %v1100, %v389
        %v1115 = vmax.f32 %v1107, %v389
        %v1116 = vlaneseq
        %v1117 = vshrl.u32 %v1116, 7
        %v1118 = vsub.s32 0, %v1117
        %v1119 = vrot.slane %v1108, %v1118
        %v1120 = vlaneseq
        %v1121 = vshrl.u32 %v1120, 7
        %v1122 = vsub.s32 0, %v1121
        %v1123 = vrot.slane %v1109, %v1122
        %v1124 = vlaneseq
        %v1125 = vshrl.u32 %v1124, 7
        %v1126 = vsub.s32 0, %v1125
        %v1127 = vrot.slane %v1110, %v1126
        %v1128 = vlaneseq
        %v1129 = vshrl.u32 %v1128, 7
        %v1130 = vsub.s32 0, %v1129
        %v1131 = vrot.slane %v1111, %v1130
        %v1132 = vlaneseq
        %v1133 = vshrl.u32 %v1132, 7
        %v1134 = vsub.s32 0, %v1133
        %v1135 = vrot.slane %v1112, %v1134
        %v1136 = vlaneseq
        %v1137 = vshrl.u32 %v1136, 7
        %v1138 = vsub.s32 0, %v1137
        %v1139 = vrot.slane %v1113, %v1138
        %v1140 = vlaneseq
        %v1141 = vshrl.u32 %v1140, 7
        %v1142 = vsub.s32 0, %v1141
        %v1143 = vrot.slane %v1114, %v1142
        %v1144 = vlaneseq
        %v1145 = vshrl.u32 %v1144, 7
        %v1146 = vsub.s32 0, %v1145
        %v1147 = vrot.slane %v1115, %v1146
        %v1148 = vsub.f32 %v1044, %v1119
        %v1149 = vsub.f32 %v1045, %v1123
        %v1150 = vsub.f32 %v1046, %v1127
        %v1151 = vsub.f32 %v1047, %v1131
        %v1152 = vsub.f32 %v1048, %v1135
        %v1153 = vsub.f32 %v1049, %v1139
        %v1154 = vsub.f32 %v1050, %v1143
        %v1155 = vsub.f32 %v1051, %v1147
        %v1156 = vmul.f32 %v1148, 1.442695
        %v1157 = vpow.pop %v1156
        %v1158 = vmul.f32 %v1149, 1.442695
        %v1159 = vpow.pop %v1158
        %v1160 = vmul.f32 %v1150, 1.442695
        %v1161 = vpow.pop %v1160
        %v1162 = vmul.f32 %v1151, 1.442695
        %v1163 = vpow.pop %v1162
        %v1164 = vmul.f32 %v1152, 1.442695
        %v1165 = vpow.pop %v1164
        %v1166 = vmul.f32 %v1153, 1.442695
        %v1167 = vpow.pop %v1166
        %v1168 = vmul.f32 %v1154, 1.442695
        %v1169 = vpow.pop %v1168
        %v1170 = vmul.f32 %v1155, 1.442695
        %v1171 = vpow.pop %v1170
        %v1172 = vsel %vm599, %v1157, 0.0
        %v1173 = vrot.slane %v1172, 4
        %v1174 = vadd.f32 %v1172, %v1173
        %v1175 = vrot.slane %v1174, 2
        %v1176 = vadd.f32 %v1174, %v1175
        %v1177 = vrot.slane %v1176, 1
        %v1178 = vadd.f32 %v1176, %v1177
        %v1179 = vsel %vm599, %v1159, 0.0
        %v1180 = vrot.slane %v1179, 4
        %v1181 = vadd.f32 %v1179, %v1180
        %v1182 = vrot.slane %v1181, 2
        %v1183 = vadd.f32 %v1181, %v1182
        %v1184 = vrot.slane %v1183, 1
        %v1185 = vadd.f32 %v1183, %v1184
        %v1186 = vsel %vm599, %v1161, 0.0
        %v1187 = vrot.slane %v1186, 4
        %v1188 = vadd.f32 %v1186, %v1187
        %v1189 = vrot.slane %v1188, 2
        %v1190 = vadd.f32 %v1188, %v1189
        %v1191 = vrot.slane %v1190, 1
        %v1192 = vadd.f32 %v1190, %v1191
        %v1193 = vsel %vm599, %v1163, 0.0
        %v1194 = vrot.slane %v1193, 4
        %v1195 = vadd.f32 %v1193, %v1194
        %v1196 = vrot.slane %v1195, 2
        %v1197 = vadd.f32 %v1195, %v1196
        %v1198 = vrot.slane %v1197, 1
        %v1199 = vadd.f32 %v1197, %v1198
        %v1200 = vsel %vm599, %v1165, 0.0
        %v1201 = vrot.slane %v1200, 4
        %v1202 = vadd.f32 %v1200, %v1201
        %v1203 = vrot.slane %v1202, 2
        %v1204 = vadd.f32 %v1202, %v1203
        %v1205 = vrot.slane %v1204, 1
        %v1206 = vadd.f32 %v1204, %v1205
        %v1207 = vsel %vm599, %v1167, 0.0
        %v1208 = vrot.slane %v1207, 4
        %v1209 = vadd.f32 %v1207, %v1208
        %v1210 = vrot.slane %v1209, 2
        %v1211 = vadd.f32 %v1209, %v1210
        %v1212 = vrot.slane %v1211, 1
        %v1213 = vadd.f32 %v1211, %v1212
        %v1214 = vsel %vm599, %v1169, 0.0
        %v1215 = vrot.slane %v1214, 4
        %v1216 = vadd.f32 %v1214, %v1215
        %v1217 = vrot.slane %v1216, 2
        %v1218 = vadd.f32 %v1216, %v1217
        %v1219 = vrot.slane %v1218, 1
        %v1220 = vadd.f32 %v1218, %v1219
        %v1221 = vsel %vm599, %v1171, 0.0
        %v1222 = vrot.slane %v1221, 4
        %v1223 = vadd.f32 %v1221, %v1222
        %v1224 = vrot.slane %v1223, 2
        %v1225 = vadd.f32 %v1223, %v1224
        %v1226 = vrot.slane %v1225, 1
        %v1227 = vadd.f32 %v1225, %v1226
        %v1228 = vsub.f32 %v389, %v1108
        %v1229 = vsub.f32 %v389, %v1109
        %v1230 = vsub.f32 %v389, %v1110
        %v1231 = vsub.f32 %v389, %v1111
        %v1232 = vsub.f32 %v389, %v1112
        %v1233 = vsub.f32 %v389, %v1113
        %v1234 = vsub.f32 %v389, %v1114
        %v1235 = vsub.f32 %v389, %v1115
        %v1236 = vmul.f32 %v1228, 1.442695
        %v1237 = vpow.pop %v1236
        %v1238 = vmul.f32 %v1229, 1.442695
        %v1239 = vpow.pop %v1238
        %v1240 = vmul.f32 %v1230, 1.442695
        %v1241 = vpow.pop %v1240
        %v1242 = vmul.f32 %v1231, 1.442695
        %v1243 = vpow.pop %v1242
        %v1244 = vmul.f32 %v1232, 1.442695
        %v1245 = vpow.pop %v1244
        %v1246 = vmul.f32 %v1233, 1.442695
        %v1247 = vpow.pop %v1246
        %v1248 = vmul.f32 %v1234, 1.442695
        %v1249 = vpow.pop %v1248
        %v1250 = vmul.f32 %v1235, 1.442695
        %v1251 = vpow.pop %v1250
        %v1252 = vadd.f32 %v1178, %v1237
        %v1253 = vadd.f32 %v1185, %v1239
        %v1254 = vadd.f32 %v1192, %v1241
        %v1255 = vadd.f32 %v1199, %v1243
        %v1256 = vadd.f32 %v1206, %v1245
        %v1257 = vadd.f32 %v1213, %v1247
        %v1258 = vadd.f32 %v1220, %v1249
        %v1259 = vadd.f32 %v1227, %v1251
        %v1260 = vrcp.pop %v1252
        %v1261 = vrcp.pop %v1253
        %v1262 = vrcp.pop %v1254
        %v1263 = vrcp.pop %v1255
        %v1264 = vrcp.pop %v1256
        %v1265 = vrcp.pop %v1257
        %v1266 = vrcp.pop %v1258
        %v1267 = vrcp.pop %v1259
        %v1268 = vlaneseq
        %v1269 = vshrl.u32 %v1268, 7
        %v1270 = vsub.s32 0, %v1269
        %v1271 = vrot.slane %v1260, %v1270
        %v1272 = vlaneseq
        %v1273 = vshrl.u32 %v1272, 7
        %v1274 = vsub.s32 0, %v1273
        %v1275 = vrot.slane %v1261, %v1274
        %v1276 = vlaneseq
        %v1277 = vshrl.u32 %v1276, 7
        %v1278 = vsub.s32 0, %v1277
        %v1279 = vrot.slane %v1262, %v1278
        %v1280 = vlaneseq
        %v1281 = vshrl.u32 %v1280, 7
        %v1282 = vsub.s32 0, %v1281
        %v1283 = vrot.slane %v1263, %v1282
        %v1284 = vlaneseq
        %v1285 = vshrl.u32 %v1284, 7
        %v1286 = vsub.s32 0, %v1285
        %v1287 = vrot.slane %v1264, %v1286
        %v1288 = vlaneseq
        %v1289 = vshrl.u32 %v1288, 7
        %v1290 = vsub.s32 0, %v1289
        %v1291 = vrot.slane %v1265, %v1290
        %v1292 = vlaneseq
        %v1293 = vshrl.u32 %v1292, 7
        %v1294 = vsub.s32 0, %v1293
        %v1295 = vrot.slane %v1266, %v1294
        %v1296 = vlaneseq
        %v1297 = vshrl.u32 %v1296, 7
        %v1298 = vsub.s32 0, %v1297
        %v1299 = vrot.slane %v1267, %v1298
        %v1300 = vmul.f32 %v1157, %v1271
        %v1301 = vmul.f32 %v1159, %v1275
        %v1302 = vmul.f32 %v1161, %v1279
        %v1303 = vmul.f32 %v1163, %v1283
        %v1304 = vmul.f32 %v1165, %v1287
        %v1305 = vmul.f32 %v1167, %v1291
        %v1306 = vmul.f32 %v1169, %v1295
        %v1307 = vmul.f32 %v1171, %v1299
        %1309 = vset.pattern.permute.xlu0 0
        %1310 = vperm.xlu0 %1309, %v1300
        %v1311 = vpop.permute.xlu0 %1310
        %1314 = vset.pattern.permute.xlu0 0
        %1315 = vperm.xlu0 %1314, %v1301
        %v1316 = vpop.permute.xlu0 %1315
        %1319 = vset.pattern.permute.xlu0 0
        %1320 = vperm.xlu0 %1319, %v1302
        %v1321 = vpop.permute.xlu0 %1320
        %1324 = vset.pattern.permute.xlu0 0
        %1325 = vperm.xlu0 %1324, %v1303
        %v1326 = vpop.permute.xlu0 %1325
        %1329 = vset.pattern.permute.xlu0 0
        %1330 = vperm.xlu0 %1329, %v1304
        %v1331 = vpop.permute.xlu0 %1330
        %1334 = vset.pattern.permute.xlu0 0
        %1335 = vperm.xlu0 %1334, %v1305
        %v1336 = vpop.permute.xlu0 %1335
        %1339 = vset.pattern.permute.xlu0 0
        %1340 = vperm.xlu0 %1339, %v1306
        %v1341 = vpop.permute.xlu0 %1340
        %1344 = vset.pattern.permute.xlu0 0
        %1345 = vperm.xlu0 %1344, %v1307
        %v1346 = vpop.permute.xlu0 %1345
        %v1348 = vmul.f32 %v377, %v1311
        %v1349 = vmul.f32 %v378, %v1316
        %v1350 = vmul.f32 %v379, %v1321
        %v1351 = vmul.f32 %v380, %v1326
        %v1352 = vmul.f32 %v381, %v1331
        %v1353 = vmul.f32 %v382, %v1336
        %v1354 = vmul.f32 %v383, %v1341
        %v1355 = vmul.f32 %v384, %v1346
        %v1356 = vsel %vm412, %v1348, 0.0
        %v1357 = vrot.slane %v1356, 4
        %v1358 = vadd.f32 %v1356, %v1357
        %v1359 = vrot.slane %v1358, 2
        %v1360 = vadd.f32 %v1358, %v1359
        %v1361 = vrot.slane %v1360, 1
        %v1362 = vadd.f32 %v1360, %v1361
        %v1363 = vsel %vm412, %v1349, 0.0
        %v1364 = vrot.slane %v1363, 4
        %v1365 = vadd.f32 %v1363, %v1364
        %v1366 = vrot.slane %v1365, 2
        %v1367 = vadd.f32 %v1365, %v1366
        %v1368 = vrot.slane %v1367, 1
        %v1369 = vadd.f32 %v1367, %v1368
        %v1370 = vsel %vm412, %v1350, 0.0
        %v1371 = vrot.slane %v1370, 4
        %v1372 = vadd.f32 %v1370, %v1371
        %v1373 = vrot.slane %v1372, 2
        %v1374 = vadd.f32 %v1372, %v1373
        %v1375 = vrot.slane %v1374, 1
        %v1376 = vadd.f32 %v1374, %v1375
        %v1377 = vsel %vm412, %v1351, 0.0
        %v1378 = vrot.slane %v1377, 4
        %v1379 = vadd.f32 %v1377, %v1378
        %v1380 = vrot.slane %v1379, 2
        %v1381 = vadd.f32 %v1379, %v1380
        %v1382 = vrot.slane %v1381, 1
        %v1383 = vadd.f32 %v1381, %v1382
        %v1384 = vsel %vm412, %v1352, 0.0
        %v1385 = vrot.slane %v1384, 4
        %v1386 = vadd.f32 %v1384, %v1385
        %v1387 = vrot.slane %v1386, 2
        %v1388 = vadd.f32 %v1386, %v1387
        %v1389 = vrot.slane %v1388, 1
        %v1390 = vadd.f32 %v1388, %v1389
        %v1391 = vsel %vm412, %v1353, 0.0
        %v1392 = vrot.slane %v1391, 4
        %v1393 = vadd.f32 %v1391, %v1392
        %v1394 = vrot.slane %v1393, 2
        %v1395 = vadd.f32 %v1393, %v1394
        %v1396 = vrot.slane %v1395, 1
        %v1397 = vadd.f32 %v1395, %v1396
        %v1398 = vsel %vm412, %v1354, 0.0
        %v1399 = vrot.slane %v1398, 4
        %v1400 = vadd.f32 %v1398, %v1399
        %v1401 = vrot.slane %v1400, 2
        %v1402 = vadd.f32 %v1400, %v1401
        %v1403 = vrot.slane %v1402, 1
        %v1404 = vadd.f32 %v1402, %v1403
        %v1405 = vsel %vm412, %v1355, 0.0
        %v1406 = vrot.slane %v1405, 4
        %v1407 = vadd.f32 %v1405, %v1406
        %v1408 = vrot.slane %v1407, 2
        %v1409 = vadd.f32 %v1407, %v1408
        %v1410 = vrot.slane %v1409, 1
        %v1411 = vadd.f32 %v1409, %v1410
        %vm1420 = vcmask 1041409
        %v1421 = vsel %vm1420, %v945, %v936
        %vm1422 = vcmask 1042434
        %v1423 = vsel %vm1422, %v954, %v1421
        %vm1424 = vcmask 1043459
        %v1425 = vsel %vm1424, %v963, %v1423
        %vm1426 = vcmask 1044484
        %v1427 = vsel %vm1426, %v972, %v1425
        %vm1428 = vcmask 1045509
        %v1429 = vsel %vm1428, %v981, %v1427
        %vm1430 = vcmask 1046534
        %v1431 = vsel %vm1430, %v990, %v1429
        %vm1432 = vcmask 1047559
        %v1433 = vsel %vm1432, %v999, %v1431
        %1435 = vst.msk [vmem:[%s354] sm:$0xff] %vm412, %v1433
        %v1444 = vsel %vm1420, %v1369, %v1362
        %v1445 = vsel %vm1422, %v1376, %v1444
        %v1446 = vsel %vm1424, %v1383, %v1445
        %v1447 = vsel %vm1426, %v1390, %v1446
        %v1448 = vsel %vm1428, %v1397, %v1447
        %v1449 = vsel %vm1430, %v1404, %v1448
        %v1450 = vsel %vm1432, %v1411, %v1449
        %1451 = vrot.lane.b32.xlu0 %v1450, 64
        %v1452 = vpop.permute.xlu0 %1451
        %vm1454 = vcmask 1048064
        %1455 = vst.msk [vmem:[%s354] sm:$0xff] %vm1454, %v1452
        %s1456 = sand.u32 %s201, 1
        %s1457 = scalar_lea.sflag [#allocation6], %s1456
        %s1458 = sand.u32 %s201, 1
        %s1459 = smul.addr %s1458, 8
        %s1460 = scalar_lea.vmem [#allocation9], %s1459
        // Predicated region
        $region57: #{tpu_custom_call.1} parent=47 // pred_check
          %p1461 = pneg %p211
        $region58: #{tpu_custom_call.1} parent=47 // pred_check_branch
          %1463 = sbr.rel (%p1461) target = $region60
        $region59: #{tpu_custom_call.1} parent=47 // pred_region
          %s1465 = ssub.s32 128, 128
          %1466 = vsyncadd %s1457, %s1465
          %s1467 = smul.addr %s31, 128
          %s1468 = scalar_lea.hbm %s7, %s1467
          %s1470 = sshll.u32 %s1460, 4
          %s1471 = int_to_ptr.vmem [resolvable:$true] %s1470
          %1473 = dma.vmem_to_hbm [thread:$0]  %s1471, 128, %s1468, %s1457
        $region60: #{tpu_custom_call.1} parent=47 // pred_fallthru
          _
      $region48: #{tpu_custom_call.1} parent=5 // pred_fallthru
        _
      %p1474 = scmp.le.s32.totalorder 2, %s26
      // Predicated region
      $region61: #{tpu_custom_call.1} parent=5 // pred_check
        %p1475 = pneg %p1474
      $region62: #{tpu_custom_call.1} parent=5 // pred_check_branch
        %1477 = sbr.rel (%p1475) target = $region64
      $region63: #{tpu_custom_call.1} parent=5 // pred_region
        %s1478 = ssub.s32 %s26, 2
        // Predicated region
        $region65: #{tpu_custom_call.1} parent=63 // pred_check
          %p1479 = pneg %p217
        $region66: #{tpu_custom_call.1} parent=63 // pred_check_branch
          %1481 = sbr.rel (%p1479) target = $region68
        $region67: #{tpu_custom_call.1} parent=63 // pred_region
          %s1482 = sand.u32 %s202, 1
          %s1483 = scalar_lea.sflag [#allocation6], %s1482
          %s1484 = sand.u32 %s202, 1
          %s1485 = smul.addr %s1484, 8
          %s1486 = scalar_lea.vmem [#allocation9], %s1485
          %1487 = dma.done %s1483, 128
        $region68: #{tpu_custom_call.1} parent=63 // pred_fallthru
          _
      $region64: #{tpu_custom_call.1} parent=5 // pred_fallthru
        _
    $region6: #{tpu_custom_call.1} parent=1 // loop_footer
      %s30 = sadd.s32 1, %s26
    $region7: #{tpu_custom_call.1} parent=1 // loop_footer_branch
      %25 = sbr.rel target = $region3
    $region8: #{tpu_custom_call.1} parent=1 // loop_exit
      _
    %1488 = vsyncpa [#allocation5], 1
    %s1489 = scalar_lea.sflag [#allocation5], 1
    %1490 = vsyncpa %s1489, 1
    %1491 = vsyncpa [#allocation8], 1
    %s1492 = scalar_lea.sflag [#allocation8], 1
    %1493 = vsyncpa %s1492, 1
    %1494 = vsyncpa [#allocation6], 1
    %s1495 = scalar_lea.sflag [#allocation6], 1
    %1496 = vsyncpa %s1495, 1

</llo_original>
